<compile_context>
chip_gen: v6e
topology: v6e:2x2x1
jax: 0.10.0
libtpu: 0.0.40
codegen_flags: <defaults>
</compile_context>

<pallas_src>
import functools

import jax
import jax.numpy as jnp
from jax.experimental import pallas as pl
from jax.experimental.pallas import tpu as pltpu

BN_EPS = 1e-5
LANE = 128


def _vmem_limit_bytes():
    """VMEM budget valid on every generation (v7x has only 64 MiB per TC)."""
    try:
        cap = int(pltpu.get_tpu_info().vmem_capacity_bytes)
    except Exception:
        cap = 64 * 1024 * 1024
    return max(32 * 1024 * 1024, min(cap, 64 * 1024 * 1024) - 16 * 1024 * 1024)


def _pick_strip_rows(H, W, K, Cin, itemsize=2, budget=2 * 1024 * 1024):
    """Largest divisor of H whose (strip_rows*W, K*K*Cin) patch buffer fits
    `budget` (bounds in-kernel VMEM for large images); prefer strips whose row
    count * W is 8-aligned so strip stores are unmasked."""
    divisors = [d for d in range(H, 0, -1) if H % d == 0]
    for aligned_only in (True, False):
        for d in divisors:
            if aligned_only and (d * W) % 8 != 0:
                continue
            if d * W * K * K * Cin * itemsize <= budget:
                return d
    return 1


def _conv_stats_kernel(xp_ref, w_ref, y_ref, ssum_ref, ssq_ref, *,
                       K, pad, TH, H, W):
    """Pass 1 — one image per grid step: conv + per-image BN partial sums.

    xp_ref:   (1, H+2p, W+2p, Cin)  padded input image (compute dtype)
    w_ref:    (K*K*Cin, Cout_pad)   flattened weights; constant index map so
                                    the block is DMA'd only once.
    y_ref:    (H*W, Cout_pad)       conv output, stored as bf16.
    ssum_ref: (1, 1, Cout_pad) f32  per-image sum   (from the f32 accumulator).
    ssq_ref:  (1, 1, Cout_pad) f32  per-image sumsq.
    """
    x = xp_ref[0]                                   # (Hp, Wp, Cin)
    cin = x.shape[-1]
    cout_p = w_ref.shape[-1]
    n_strips = H // TH

    ssum = jnp.zeros((1, cout_p), jnp.float32)
    ssq = jnp.zeros((1, cout_p), jnp.float32)
    # Static strip loop bounds the materialized patch buffer; the padded image
    # itself stays whole-image resident (fine at NASBench-101/CIFAR sizes).
    # TODO(synk): for large spatial inputs, strip-block the *input* too via a
    # manual halo DMA from a pl.ANY ref instead of whole-image blocks.
    for s in range(n_strips):
        r0 = s * TH
        xs = x[r0:r0 + TH + 2 * pad]                # halo view (TH+2p, Wp, Cin)
        # K^2 shifted views concatenated along channels -> (TH*W, K*K*Cin),
        # VMEM only (no K^2-duplicated tensor in HBM).
        # TODO(synk): for lane-sparse Cin (<128) this concat is a masked
        # relayout; fall back to K^2 accumulated depth-Cin matmuls if the
        # bundle dump shows vld/vst slots saturating on it.
        cols = [xs[dy:dy + TH, dx:dx + W, :]
                for dy in range(K) for dx in range(K)]
        patches = jnp.concatenate(cols, axis=-1).reshape(TH * W, K * K * cin)
        # Single MXU matmul, contraction depth K*K*Cin, f32 accumulation.
        yb = jnp.dot(patches, w_ref[...], preferred_element_type=jnp.float32)
        y_ref[pl.ds(r0 * W, TH * W), :] = yb.astype(y_ref.dtype)
        # Training-mode BN partial statistics from the f32 values.
        # TODO(synk): compensated/Welford accumulation for very large N*H*W to
        # avoid E[x^2]-E[x]^2 cancellation in f32.
        ssum = ssum + jnp.sum(yb, axis=0, keepdims=True)
        ssq = ssq + jnp.sum(yb * yb, axis=0, keepdims=True)
    ssum_ref[0] = ssum
    ssq_ref[0] = ssq


def _bn_relu_kernel(y_ref, scale_ref, shift_ref, o_ref):
    """Pass 2 — fused BN affine + ReLU, writing the NCHW-layout output directly.

    y_ref:     (TSP, 128) bf16 conv activations (NHWC-flat rows).
    scale_ref: (1, 128)  f32 precomputed gamma * rsqrt(var + eps).
    shift_ref: (1, 128)  f32 precomputed beta - mean * scale.
    o_ref:     (1, crop, TSP) f32 block of the (N, Cout, H*W) output.
    """
    y = y_ref[...].astype(jnp.float32)
    z = jnp.maximum(y * scale_ref[...] + shift_ref[...], 0.0)
    zt = z.T                                        # XLU transpose; pass is mem-bound
    crop = o_ref.shape[1]
    o_ref[0] = zt if crop == zt.shape[0] else zt[:crop]


def _get_active_filter(w_full, active_ks, transform_matrices):
    """OFA KernelTransformDynamicConv2d parameter setup (glue): center-crop the
    max kernel and apply the identity-initialized transform matrix."""
    kmax = w_full.shape[-1]
    if active_ks == kmax:
        return w_full
    start = (kmax - active_ks) // 2
    w = w_full[:, :, start:start + active_ks, start:start + active_ks]
    tm = transform_matrices[active_ks]              # (ks*ks, ks*ks)
    co, ci = w.shape[:2]
    w = w.reshape(co * ci, active_ks * active_ks) @ tm
    return w.reshape(co, ci, active_ks, active_ks)


def dynamic_relu_conv_bn_ofa(x_nchw, w_full_oikk, gamma, beta,
                             active_kernel_size, transform_matrices,
                             compute_dtype=jnp.bfloat16):
    # TODO(synk): running_mean/running_var momentum updates of
    # DynamicBatchNorm2d are training side-effects and are not materialized.
    N, Cin, H, W = x_nchw.shape
    K = active_kernel_size
    pad = K // 2
    HW = H * W
    assert HW % 8 == 0, "H*W must be a multiple of 8"  # TODO(synk): pad rows otherwise
    w_active = _get_active_filter(w_full_oikk, K, transform_matrices)
    Cout = w_active.shape[0]
    Cout_pad = ((Cout + LANE - 1) // LANE) * LANE   # lane-dense channel axis
    Hp, Wp = H + 2 * pad, W + 2 * pad
    NHW = N * HW
    vmem_limit = _vmem_limit_bytes()

    # ---- layout / parameter glue (no meaningful FLOPs) ----
    x_nhwc = jnp.transpose(x_nchw, (0, 2, 3, 1)).astype(compute_dtype)
    xp = jnp.pad(x_nhwc, ((0, 0), (pad, pad), (pad, pad), (0, 0)))
    w_flat = jnp.transpose(w_active, (2, 3, 1, 0)).reshape(K * K * Cin, Cout)
    w_flat = jnp.pad(w_flat, ((0, 0), (0, Cout_pad - Cout))).astype(compute_dtype)
    gamma_p = jnp.pad(gamma.astype(jnp.float32),
                      (0, Cout_pad - Cout)).reshape(1, Cout_pad)
    beta_p = jnp.pad(beta.astype(jnp.float32),
                     (0, Cout_pad - Cout)).reshape(1, Cout_pad)

    # ---- pass 1: conv (big-contraction matmul) + per-image BN sums ----------
    # Batch axis is "parallel" (megacore on v7x; each image writes disjoint
    # y / ssum / ssq blocks, so this is safe).
    # TODO(synk): for N == 1 add a row-strip grid axis as the parallel axis.
    TH = _pick_strip_rows(H, W, K, Cin)
    y_flat, ssum, ssq = pl.pallas_call(
        functools.partial(_conv_stats_kernel, K=K, pad=pad, TH=TH, H=H, W=W),
        grid=(N,),
        in_specs=[
            pl.BlockSpec((1, Hp, Wp, Cin), lambda b: (b, 0, 0, 0)),
            pl.BlockSpec((K * K * Cin, Cout_pad), lambda b: (0, 0)),
        ],
        out_specs=(
            pl.BlockSpec((HW, Cout_pad), lambda b: (b, 0)),
            pl.BlockSpec((1, 1, Cout_pad), lambda b: (b, 0, 0)),
            pl.BlockSpec((1, 1, Cout_pad), lambda b: (b, 0, 0)),
        ),
        out_shape=(
            jax.ShapeDtypeStruct((NHW, Cout_pad), jnp.bfloat16),  # bf16 intermediate
            jax.ShapeDtypeStruct((N, 1, Cout_pad), jnp.float32),
            jax.ShapeDtypeStruct((N, 1, Cout_pad), jnp.float32),
        ),
        compiler_params=pltpu.CompilerParams(
            dimension_semantics=("parallel",),
            vmem_limit_bytes=vmem_limit),
    )(xp, w_flat)

    # ---- hoisted BN finalize: O(Cout) work, once, outside the hot loops ----
    cnt = jnp.float32(NHW)
    mean = ssum.sum(axis=0) / cnt                   # (1, Cout_pad)
    var = jnp.maximum(ssq.sum(axis=0) / cnt - mean * mean, 0.0)
    scale = jax.lax.rsqrt(var + BN_EPS) * gamma_p
    shift = beta_p - mean * scale

    # ---- pass 2: fused affine + ReLU, output written directly in NCHW ------
    TSP = HW                                        # spatial rows per tile
    if TSP > 2048:
        for cand in (2048, 1024, 512, 256, 128):
            if HW % cand == 0:
                TSP = cand
                break
    n_sp = HW // TSP
    if Cout % LANE == 0:
        out_C, crop = Cout, LANE                    # no channel padding at all
    elif Cout < LANE:
        out_C, crop = Cout, Cout                    # crop inside the kernel
    else:
        # TODO(synk): Cout > 128 and not lane-aligned keeps padded channels
        # and slices them off in XLA below.
        out_C, crop = Cout_pad, LANE

    out_flat = pl.pallas_call(
        _bn_relu_kernel,
        grid=(N, out_C // crop, n_sp),
        in_specs=[
            pl.BlockSpec((TSP, LANE), lambda b, c, s: (b * n_sp + s, c)),
            pl.BlockSpec((1, LANE), lambda b, c, s: (0, c)),
            pl.BlockSpec((1, LANE), lambda b, c, s: (0, c)),
        ],
        out_specs=pl.BlockSpec((1, crop, TSP), lambda b, c, s: (b, c, s)),
        out_shape=jax.ShapeDtypeStruct((N, out_C, HW), jnp.float32),
        compiler_params=pltpu.CompilerParams(
            dimension_semantics=("parallel", "parallel", "parallel"),
            vmem_limit_bytes=vmem_limit),
    )(y_flat, scale, shift)

    if out_C != Cout:
        out_flat = out_flat[:, :Cout, :]
    return out_flat.reshape(N, Cout, H, W)          # free: already NCHW order


def _reference(x_nchw, w_active, gamma, beta):
    """Pure-JAX reference: conv (bf16 operands, f32 accumulation, same as the
    kernel's MXU path) -> training-mode BN in f32 -> ReLU."""
    y = jax.lax.conv_general_dilated(
        x_nchw.astype(jnp.bfloat16), w_active.astype(jnp.bfloat16),
        window_strides=(1, 1), padding='SAME',
        dimension_numbers=('NCHW', 'OIHW', 'NCHW'),
        preferred_element_type=jnp.float32)
    mean = y.mean(axis=(0, 2, 3), keepdims=True)
    var = jnp.square(y - mean).mean(axis=(0, 2, 3), keepdims=True)
    y = (y - mean) * jax.lax.rsqrt(var + BN_EPS)
    y = y * gamma.reshape(1, -1, 1, 1) + beta.reshape(1, -1, 1, 1)
    return jnp.maximum(y, 0.0)


if __name__ == "__main__":
    # module config: kernel_size=3 -> kernel_size_list=[1,3]; active = max = 3
    N, Cin, H, W = 2, 4, 16, 16
    Cout = 8
    KMAX = 3
    active_kernel_size = 3

    key = jax.random.PRNGKey(0)
    kx, kw, kg, kb = jax.random.split(key, 4)
    x = jax.random.normal(kx, (N, Cin, H, W), dtype=jnp.float32)
    w_full = 0.1 * jax.random.normal(kw, (Cout, Cin, KMAX, KMAX), jnp.float32)
    gamma = 1.0 + 0.1 * jax.random.normal(kg, (Cout,), jnp.float32)
    beta = 0.1 * jax.random.normal(kb, (Cout,), jnp.float32)
    # OFA kernel-transform matrices, identity-initialized (3 -> 1 here).
    transform_matrices = {1: jnp.eye(1, dtype=jnp.float32)}

    out = dynamic_relu_conv_bn_ofa(x, w_full, gamma, beta,
                                   active_kernel_size, transform_matrices)
    out = jax.block_until_ready(out)

    w_active = _get_active_filter(w_full, active_kernel_size,
                                  transform_matrices)
    ref = _reference(x, w_active, gamma, beta)
    assert out.shape == (N, Cout, H, W)
    err = float(jnp.max(jnp.abs(out - ref)))
    # Tolerance covers the bf16 storage of the conv activation (<= ~1e-2 on
    # BN-normalized values); everything else is f32.
    assert jnp.allclose(out, ref, atol=3e-2, rtol=3e-2), err
    print("KERNEL_OK")
</pallas_src>

<mosaic_0001>
module attributes {stable_mosaic.version = 11 : i64} {
  func.func @_conv_stats_kernel(%arg0: i32, %arg1: memref<1x18x18x4xbf16, #tpu.memory_space<vmem>>, %arg2: memref<36x128xbf16, #tpu.memory_space<vmem>>, %arg3: memref<256x128xbf16, #tpu.memory_space<vmem>>, %arg4: memref<1x1x128xf32, #tpu.memory_space<vmem>>, %arg5: memref<1x1x128xf32, #tpu.memory_space<vmem>>) attributes {dimension_semantics = [#tpu.dimension_semantics<parallel>], iteration_bounds = array<i64: 2>, scalar_prefetch = 0 : i64, scratch_operands = 0 : i64, tpu.core_type = #tpu.core_type<tc>, window_params = [{transform_indices = @transform_0, window_bounds = array<i64: 1, 18, 18, 4>}, {pipeline_mode = #tpu.pipeline_mode<synchronous>, transform_indices = @transform_1, window_bounds = array<i64: 36, 128>}, {transform_indices = @transform_2, window_bounds = array<i64: 256, 128>}, {transform_indices = @transform_3, window_bounds = array<i64: 1, 1, 128>}, {transform_indices = @transform_4, window_bounds = array<i64: 1, 1, 128>}]} {
    %c0 = arith.constant 0 : index
    %c0_0 = arith.constant 0 : index
    %c0_1 = arith.constant 0 : index
    %c0_2 = arith.constant 0 : index
    %0 = vector.load %arg1[%c0, %c0_0, %c0_1, %c0_2] : memref<1x18x18x4xbf16, #tpu.memory_space<vmem>>, vector<1x18x18x4xbf16>
    %1 = vector.shape_cast %0 : vector<1x18x18x4xbf16> to vector<18x18x4xbf16>
    %cst = arith.constant 0.000000e+00 : f32
    %2 = vector.broadcast %cst : f32 to vector<1x128xf32>
    %cst_3 = arith.constant 0.000000e+00 : f32
    %3 = vector.broadcast %cst_3 : f32 to vector<1x128xf32>
    %4 = vector.extract_strided_slice %1 {offsets = [0, 0, 0], sizes = [16, 16, 4], strides = [1, 1, 1]} : vector<18x18x4xbf16> to vector<16x16x4xbf16>
    %5 = vector.extract_strided_slice %1 {offsets = [0, 1, 0], sizes = [16, 16, 4], strides = [1, 1, 1]} : vector<18x18x4xbf16> to vector<16x16x4xbf16>
    %6 = vector.extract_strided_slice %1 {offsets = [0, 2, 0], sizes = [16, 16, 4], strides = [1, 1, 1]} : vector<18x18x4xbf16> to vector<16x16x4xbf16>
    %7 = vector.extract_strided_slice %1 {offsets = [1, 0, 0], sizes = [16, 16, 4], strides = [1, 1, 1]} : vector<18x18x4xbf16> to vector<16x16x4xbf16>
    %8 = vector.extract_strided_slice %1 {offsets = [1, 1, 0], sizes = [16, 16, 4], strides = [1, 1, 1]} : vector<18x18x4xbf16> to vector<16x16x4xbf16>
    %9 = vector.extract_strided_slice %1 {offsets = [1, 2, 0], sizes = [16, 16, 4], strides = [1, 1, 1]} : vector<18x18x4xbf16> to vector<16x16x4xbf16>
    %10 = vector.extract_strided_slice %1 {offsets = [2, 0, 0], sizes = [16, 16, 4], strides = [1, 1, 1]} : vector<18x18x4xbf16> to vector<16x16x4xbf16>
    %11 = vector.extract_strided_slice %1 {offsets = [2, 1, 0], sizes = [16, 16, 4], strides = [1, 1, 1]} : vector<18x18x4xbf16> to vector<16x16x4xbf16>
    %12 = vector.extract_strided_slice %1 {offsets = [2, 2, 0], sizes = [16, 16, 4], strides = [1, 1, 1]} : vector<18x18x4xbf16> to vector<16x16x4xbf16>
    %13 = tpu.concatenate %4, %5, %6, %7, %8, %9, %10, %11, %12 in 2 : vector<16x16x4xbf16>, vector<16x16x4xbf16>, vector<16x16x4xbf16>, vector<16x16x4xbf16>, vector<16x16x4xbf16>, vector<16x16x4xbf16>, vector<16x16x4xbf16>, vector<16x16x4xbf16>, vector<16x16x4xbf16> -> vector<16x16x36xbf16>
    %14 = vector.shape_cast %13 : vector<16x16x36xbf16> to vector<256x36xbf16>
    %c0_4 = arith.constant 0 : index
    %c0_5 = arith.constant 0 : index
    %15 = vector.load %arg2[%c0_4, %c0_5] : memref<36x128xbf16, #tpu.memory_space<vmem>>, vector<36x128xbf16>
    %cst_6 = arith.constant dense<0.000000e+00> : vector<256x128xf32>
    %16 = tpu.matmul %14, %15, %cst_6 {dimension_numbers = #tpu.dot_dimension_numbers<[1], [0], [0], [1], [0, 0, 1, 1], [], []>} : vector<256x36xbf16>, vector<36x128xbf16>, vector<256x128xf32> -> vector<256x128xf32>
    %17 = arith.truncf %16 : vector<256x128xf32> to vector<256x128xbf16>
    %c0_7 = arith.constant 0 : index
    %c0_8 = arith.constant 0 : index
    %18 = vector.load %arg3[%c0_7, %c0_8] : memref<256x128xbf16, #tpu.memory_space<vmem>>, vector<256x128xbf16>
    tpu.vector_store %arg3[%c0_7, %c0_8], %17 {strides = array<i32>} : memref<256x128xbf16, #tpu.memory_space<vmem>>, vector<256x128xbf16>,
    %cst_9 = arith.constant dense<0.000000e+00> : vector<128xf32>
    %19 = vector.multi_reduction <add>, %16, %cst_9 [0] : vector<256x128xf32> to vector<128xf32>
    %20 = vector.shape_cast %19 : vector<128xf32> to vector<1x128xf32>
    %21 = arith.addf %2, %20 : vector<1x128xf32>
    %22 = arith.mulf %16, %16 : vector<256x128xf32>
    %cst_10 = arith.constant dense<0.000000e+00> : vector<128xf32>
    %23 = vector.multi_reduction <add>, %22, %cst_10 [0] : vector<256x128xf32> to vector<128xf32>
    %24 = vector.shape_cast %23 : vector<128xf32> to vector<1x128xf32>
    %25 = arith.addf %3, %24 : vector<1x128xf32>
    %c0_11 = arith.constant 0 : index
    %c0_12 = arith.constant 0 : index
    %c0_13 = arith.constant 0 : index
    %26 = vector.load %arg4[%c0_11, %c0_12, %c0_13] : memref<1x1x128xf32, #tpu.memory_space<vmem>>, vector<1x1x128xf32>
    %27 = vector.shape_cast %26 : vector<1x1x128xf32> to vector<1x128xf32>
    %28 = vector.shape_cast %21 : vector<1x128xf32> to vector<1x1x128xf32>
    tpu.vector_store %arg4[%c0_11, %c0_12, %c0_13], %28 {strides = array<i32>} : memref<1x1x128xf32, #tpu.memory_space<vmem>>, vector<1x1x128xf32>,
    %c0_14 = arith.constant 0 : index
    %c0_15 = arith.constant 0 : index
    %c0_16 = arith.constant 0 : index
    %29 = vector.load %arg5[%c0_14, %c0_15, %c0_16] : memref<1x1x128xf32, #tpu.memory_space<vmem>>, vector<1x1x128xf32>
    %30 = vector.shape_cast %29 : vector<1x1x128xf32> to vector<1x128xf32>
    %31 = vector.shape_cast %25 : vector<1x128xf32> to vector<1x1x128xf32>
    tpu.vector_store %arg5[%c0_14, %c0_15, %c0_16], %31 {strides = array<i32>} : memref<1x1x128xf32, #tpu.memory_space<vmem>>, vector<1x1x128xf32>,
    return
  }
  func.func @transform_0(%arg0: i32) -> (i32, i32, i32, i32) {
    %c0_i32 = arith.constant 0 : i32
    %c0_i32_0 = arith.constant 0 : i32
    %c0_i32_1 = arith.constant 0 : i32
    %c0_i32_2 = arith.constant 0 : i32
    return %arg0, %c0_i32, %c0_i32_0, %c0_i32_1 : i32, i32, i32, i32
  }
  func.func @transform_1(%arg0: i32) -> (i32, i32) {
    %c0_i32 = arith.constant 0 : i32
    %c0_i32_0 = arith.constant 0 : i32
    %c0_i32_1 = arith.constant 0 : i32
    return %c0_i32, %c0_i32_0 : i32, i32
  }
  func.func @transform_2(%arg0: i32) -> (i32, i32) {
    %c0_i32 = arith.constant 0 : i32
    %c0_i32_0 = arith.constant 0 : i32
    return %arg0, %c0_i32 : i32, i32
  }
  func.func @transform_3(%arg0: i32) -> (i32, i32, i32) {
    %c0_i32 = arith.constant 0 : i32
    %c0_i32_0 = arith.constant 0 : i32
    %c0_i32_1 = arith.constant 0 : i32
    return %arg0, %c0_i32, %c0_i32_0 : i32, i32, i32
  }
  func.func @transform_4(%arg0: i32) -> (i32, i32, i32) {
    %c0_i32 = arith.constant 0 : i32
    %c0_i32_0 = arith.constant 0 : i32
    %c0_i32_1 = arith.constant 0 : i32
    return %arg0, %c0_i32, %c0_i32_0 : i32, i32, i32
  }
}

</mosaic_0001>

<llo_original>
// kernel: tpu_custom_call.1
$region0: #{tpu_custom_call.1}
  #allocation0 [shape = 'u32[]', space=smem, size = 0x4, offset = 0x4, fixed_abs, tag = 'smem constant byte address 0x4 - core index']
  #allocation1 [shape = 'u32[144,128]{1,0:T(1,128)}', space=vmem, size = 0x12000, scoped, tag = 'internal scratch']
  %s0 = inlined_call_operand.vmem [shape: bf16[2,18,18,4], index: 0, kind: input, shape index: {}]
  %s1 = inlined_call_operand.vmem [shape: bf16[36,128], index: 1, kind: input, shape index: {}]
  %s2 = inlined_call_operand.hbm [shape: bf16[512,128], index: 2, kind: output, shape index: {0}]
  %s3 = inlined_call_operand.hbm [shape: f32[2,1,128], index: 3, kind: output, shape index: {1}]
  %s4 = inlined_call_operand.hbm [shape: f32[2,1,128], index: 4, kind: output, shape index: {2}]
  %5 = xla_tuple %s2, %s3, %s4
  %s6 = sld [smem:[#allocation0]]
  $region57: #{tpu_custom_call.1} parent=0
    _
  %s8 = ssub.s32 1, %s6
  %s9 = scalar_select 0, %s8, %s6
  $region1: #{tpu_custom_call.1} parent=0
    #allocation2 [shape = 'u8[131072]{0}', space=vmem, size = 0x20000, scoped, tag = 'output window, operand 0']
    #allocation3 [shape = 's32[2]{0}', space=sflag, size = 0x8, scoped, tag = 'scoped memory for tpu_custom_call.1']
    #allocation4 [shape = 'u8[1024]{0}', space=vmem, size = 0x400, scoped, tag = 'output window, operand 1']
    #allocation5 [shape = 's32[2]{0}', space=sflag, size = 0x8, scoped, tag = 'scoped memory for tpu_custom_call.1']
    #allocation6 [shape = 'u8[1024]{0}', space=vmem, size = 0x400, scoped, tag = 'output window, operand 2']
    %10 = vsyncpa [#allocation3], 0
    %s11 = scalar_lea.sflag [#allocation3], 1
    %12 = vsyncpa %s11, 0
    %13 = vsyncpa [#allocation5], 0
    %s14 = scalar_lea.sflag [#allocation5], 1
    %15 = vsyncpa %s14, 0
    loop: start=0, step=1, limit=4
    $region2: #{tpu_custom_call.1} parent=1 // loop_pre_header
      _
    $region3: #{tpu_custom_call.1} parent=1 // loop_header
      %s17 = sphi 0, %s21
      %p18 = scmp.ge.s32.totalorder %s17, 4
      %s27 = sphi 0, %s29
      %s30 = sphi 0, %s27
      %s31 = sphi 0, %s30
      %s47 = sphi 0, %s31
      %s51 = sphi 0, %s51
      %s53 = sphi 0, %s51
      %s54 = sphi 0, %s53
      %s68 = sphi 0, %s54
      %s74 = sphi 0, %s76
      %s77 = sphi 0, %s74
      %s78 = sphi 0, %s77
      %s94 = sphi 0, %s78
      %s100 = sphi 0, %s102
      %s103 = sphi 0, %s100
      %s104 = sphi 0, %s103
      %s120 = sphi 0, %s104
      %s126 = sphi 0, %s128
      %s129 = sphi 0, %s126
      %s130 = sphi 0, %s129
      %s146 = sphi 0, %s130
    $region4: #{tpu_custom_call.1} parent=1 // loop_header_branch
      %20 = sbr.rel (%p18) target = $region8
    $region5: #{tpu_custom_call.1} parent=1 // loop_body
      %s22 = ssub.s32 %s17, 1
      %s23 = ssub.s32 %s17, 2
      %s24 = sadd.s32 %s17, 1
      %s25 = ssub.s32 %s17, %s24
      %p26 = scmp.eq.s32.totalorder %s25, 0
      %s28 = sadd.s32 %s27, 1
      %s29 = scalar_select %p26, %s27, %s28
      %p32 = pneg %p26
      %p33 = scmp.eq.s32.totalorder %s17, 1
      %p34 = por %p32, %p33
      %p35 = scmp.ne.s32.totalorder %s27, %s30
      %p36 = scmp.eq.s32.totalorder %s17, 0
      %p37 = por %p35, %p36
      %p38 = scmp.ne.s32.totalorder %s27, %s30
      %p39 = scmp.eq.s32.totalorder %s22, 1
      %p40 = por %p38, %p39
      %p41 = scmp.ne.s32.totalorder %s30, %s31
      %p42 = scmp.eq.s32.totalorder %s22, 0
      %p43 = por %p41, %p42
      %p44 = scmp.ne.s32.totalorder %s30, %s31
      %p45 = scmp.eq.s32.totalorder %s23, 1
      %p46 = por %p44, %p45
      %p48 = scmp.ne.s32.totalorder %s31, %s47
      %p49 = scmp.eq.s32.totalorder %s23, 0
      %p50 = por %p48, %p49
      %s52 = sadd.s32 %s51, 1
      %p55 = scmp.eq.s32.totalorder %s17, 1
      %p56 = scmp.ne.s32.totalorder %s51, %s53
      %p57 = scmp.eq.s32.totalorder %s17, 0
      %p58 = por %p56, %p57
      %p59 = scmp.ne.s32.totalorder %s51, %s53
      %p60 = scmp.eq.s32.totalorder %s22, 1
      %p61 = por %p59, %p60
      %p62 = scmp.ne.s32.totalorder %s53, %s54
      %p63 = scmp.eq.s32.totalorder %s22, 0
      %p64 = por %p62, %p63
      %p65 = scmp.ne.s32.totalorder %s53, %s54
      %p66 = scmp.eq.s32.totalorder %s23, 1
      %p67 = por %p65, %p66
      %p69 = scmp.ne.s32.totalorder %s54, %s68
      %p70 = scmp.eq.s32.totalorder %s23, 0
      %p71 = por %p69, %p70
      %s72 = ssub.s32 %s17, %s24
      %p73 = scmp.eq.s32.totalorder %s72, 0
      %s75 = sadd.s32 %s74, 1
      %s76 = scalar_select %p73, %s74, %s75
      %p79 = pneg %p73
      %p80 = scmp.eq.s32.totalorder %s17, 1
      %p81 = por %p79, %p80
      %p82 = scmp.ne.s32.totalorder %s74, %s77
      %p83 = scmp.eq.s32.totalorder %s17, 0
      %p84 = por %p82, %p83
      %p85 = scmp.ne.s32.totalorder %s74, %s77
      %p86 = scmp.eq.s32.totalorder %s22, 1
      %p87 = por %p85, %p86
      %p88 = scmp.ne.s32.totalorder %s77, %s78
      %p89 = scmp.eq.s32.totalorder %s22, 0
      %p90 = por %p88, %p89
      %p91 = scmp.ne.s32.totalorder %s77, %s78
      %p92 = scmp.eq.s32.totalorder %s23, 1
      %p93 = por %p91, %p92
      %p95 = scmp.ne.s32.totalorder %s78, %s94
      %p96 = scmp.eq.s32.totalorder %s23, 0
      %p97 = por %p95, %p96
      %s98 = ssub.s32 %s17, %s24
      %p99 = scmp.eq.s32.totalorder %s98, 0
      %s101 = sadd.s32 %s100, 1
      %s102 = scalar_select %p99, %s100, %s101
      %p105 = pneg %p99
      %p106 = scmp.eq.s32.totalorder %s17, 1
      %p107 = por %p105, %p106
      %p108 = scmp.ne.s32.totalorder %s100, %s103
      %p109 = scmp.eq.s32.totalorder %s17, 0
      %p110 = por %p108, %p109
      %p111 = scmp.ne.s32.totalorder %s100, %s103
      %p112 = scmp.eq.s32.totalorder %s22, 1
      %p113 = por %p111, %p112
      %p114 = scmp.ne.s32.totalorder %s103, %s104
      %p115 = scmp.eq.s32.totalorder %s22, 0
      %p116 = por %p114, %p115
      %p117 = scmp.ne.s32.totalorder %s103, %s104
      %p118 = scmp.eq.s32.totalorder %s23, 1
      %p119 = por %p117, %p118
      %p121 = scmp.ne.s32.totalorder %s104, %s120
      %p122 = scmp.eq.s32.totalorder %s23, 0
      %p123 = por %p121, %p122
      %s124 = ssub.s32 %s17, %s24
      %p125 = scmp.eq.s32.totalorder %s124, 0
      %s127 = sadd.s32 %s126, 1
      %s128 = scalar_select %p125, %s126, %s127
      %p131 = pneg %p125
      %p132 = scmp.eq.s32.totalorder %s17, 1
      %p133 = por %p131, %p132
      %p134 = scmp.ne.s32.totalorder %s126, %s129
      %p135 = scmp.eq.s32.totalorder %s17, 0
      %p136 = por %p134, %p135
      %p137 = scmp.ne.s32.totalorder %s126, %s129
      %p138 = scmp.eq.s32.totalorder %s22, 1
      %p139 = por %p137, %p138
      %p140 = scmp.ne.s32.totalorder %s129, %s130
      %p141 = scmp.eq.s32.totalorder %s22, 0
      %p142 = por %p140, %p141
      %p143 = scmp.ne.s32.totalorder %s129, %s130
      %p144 = scmp.eq.s32.totalorder %s23, 1
      %p145 = por %p143, %p144
      %p147 = scmp.ne.s32.totalorder %s130, %s146
      %p148 = scmp.eq.s32.totalorder %s23, 0
      %p149 = por %p147, %p148
      %p150 = scmp.le.s32.totalorder 1, %s17
      %p151 = scmp.lt.s32.totalorder %s17, 3
      %p152 = pnand %p150, %p151
      %p153 = pneg %p152
      // Predicated region
      $region9: #{tpu_custom_call.1} parent=5 // pred_check
        _
      $region10: #{tpu_custom_call.1} parent=5 // pred_check_branch
        %155 = sbr.rel (%p152) target = $region12
      $region11: #{tpu_custom_call.1} parent=5 // pred_region
        %s156 = ssub.s32 %s17, 1
        // Predicated region
        $region13: #{tpu_custom_call.1} parent=11 // pred_check
          %p157 = pneg %p64
        $region14: #{tpu_custom_call.1} parent=11 // pred_check_branch
          %159 = sbr.rel (%p157) target = $region16
        $region15: #{tpu_custom_call.1} parent=11 // pred_region
          _
        $region16: #{tpu_custom_call.1} parent=11 // pred_fallthru
          _
      $region12: #{tpu_custom_call.1} parent=5 // pred_fallthru
        _
      %p160 = scmp.lt.s32.totalorder %s17, 2
      // Predicated region
      $region17: #{tpu_custom_call.1} parent=5 // pred_check
        %p161 = pneg %p160
      $region18: #{tpu_custom_call.1} parent=5 // pred_check_branch
        %163 = sbr.rel (%p161) target = $region20
      $region19: #{tpu_custom_call.1} parent=5 // pred_region
        // Predicated region
        $region21: #{tpu_custom_call.1} parent=19 // pred_check
          %p164 = pneg %p37
        $region22: #{tpu_custom_call.1} parent=19 // pred_check_branch
          %166 = sbr.rel (%p164) target = $region24
        $region23: #{tpu_custom_call.1} parent=19 // pred_region
          %p167 = scmp.lt.s32.totalorder %s17, 1
          %s168 = scalar_select %p167, %s17, 1
          %s169 = smul.addr %s168, 54
          %s170 = smul.addr %s169, 4
          %s171 = scalar_lea.vmem %s0, %s170
        $region24: #{tpu_custom_call.1} parent=19 // pred_fallthru
          _
      $region20: #{tpu_custom_call.1} parent=5 // pred_fallthru
        _
      %p172 = scmp.le.s32.totalorder 1, %s17
      %p173 = scmp.lt.s32.totalorder %s17, 3
      %p174 = pnand %p172, %p173
      %p175 = pneg %p174
      // Predicated region
      $region25: #{tpu_custom_call.1} parent=5 // pred_check
        _
      $region26: #{tpu_custom_call.1} parent=5 // pred_check_branch
        %177 = sbr.rel (%p174) target = $region28
      $region27: #{tpu_custom_call.1} parent=5 // pred_region
        %s178 = ssub.s32 %s17, 1
        %p179 = scmp.lt.s32.totalorder %s22, 1
        %s180 = scalar_select %p179, %s22, 1
        %s181 = smul.addr %s180, 54
        %s182 = smul.addr %s181, 4
        %s183 = scalar_lea.vmem %s0, %s182
        %p184 = pneg %p43
        %p185 = pneg %p40
        %p186 = pneg %p64
        %p187 = pneg %p61
        %p188 = pneg %p90
        %p189 = pneg %p87
        %s190 = sand.u32 %s77, 1
        %s191 = scalar_lea.sflag [#allocation3], %s190
        %s192 = sand.u32 %s77, 1
        %s193 = smul.addr %s192, 128
        %s194 = scalar_lea.vmem [#allocation2], %s193
        %p195 = pneg %p116
        %p196 = pneg %p113
        %s197 = sand.u32 %s22, 1
        %s198 = scalar_lea.sflag [#allocation5], %s197
        %s199 = sand.u32 %s103, 1
        %s200 = scalar_lea.vmem [#allocation4], %s199
        %p201 = pneg %p142
        %p202 = pneg %p139
        %s203 = sand.u32 %s22, 1
        %s204 = scalar_lea.sflag [#allocation5], %s203
        %s205 = sand.u32 %s129, 1
        %s206 = scalar_lea.vmem [#allocation6], %s205
        %p207 = scmp.lt.s32.totalorder %s22, 1
        %s208 = scalar_select %p207, %s22, 1
        %s209 = smul.addr %s208, 54
        %s210 = smul.addr %s209, 4
        %s211 = scalar_lea.vmem %s0, %s210
        %s212 = smul.u32 32, %s22
        %v214 = vld [vmem:[%s211] sm:$0xf]
        %v215 = vld [vmem:[%s211 + $0x4] sm:$0xf]
        %v216 = vld [vmem:[%s211 + $0x8] sm:$0x1]
        %v217 = vld [vmem:[%s211 + $0xc] sm:$0xf]
        %v218 = vld [vmem:[%s211 + $0x10] sm:$0xf]
        %v219 = vld [vmem:[%s211 + $0x14] sm:$0x1]
        %v220 = vld [vmem:[%s211 + $0x18] sm:$0xf]
        %v221 = vld [vmem:[%s211 + $0x1c] sm:$0xf]
        %v222 = vld [vmem:[%s211 + $0x20] sm:$0x1]
        %v223 = vld [vmem:[%s211 + $0x24] sm:$0xf]
        %v224 = vld [vmem:[%s211 + $0x28] sm:$0xf]
        %v225 = vld [vmem:[%s211 + $0x2c] sm:$0x1]
        %v226 = vld [vmem:[%s211 + $0x30] sm:$0xf]
        %v227 = vld [vmem:[%s211 + $0x34] sm:$0xf]
        %v228 = vld [vmem:[%s211 + $0x38] sm:$0x1]
        %v229 = vld [vmem:[%s211 + $0x3c] sm:$0xf]
        %v230 = vld [vmem:[%s211 + $0x40] sm:$0xf]
        %v231 = vld [vmem:[%s211 + $0x44] sm:$0x1]
        %v232 = vld [vmem:[%s211 + $0x48] sm:$0xf]
        %v233 = vld [vmem:[%s211 + $0x4c] sm:$0xf]
        %v234 = vld [vmem:[%s211 + $0x50] sm:$0x1]
        %v235 = vld [vmem:[%s211 + $0x54] sm:$0xf]
        %v236 = vld [vmem:[%s211 + $0x58] sm:$0xf]
        %v237 = vld [vmem:[%s211 + $0x5c] sm:$0x1]
        %v238 = vld [vmem:[%s211 + $0x60] sm:$0xf]
        %v239 = vld [vmem:[%s211 + $0x64] sm:$0xf]
        %v240 = vld [vmem:[%s211 + $0x68] sm:$0x1]
        %v241 = vld [vmem:[%s211 + $0x6c] sm:$0xf]
        %v242 = vld [vmem:[%s211 + $0x70] sm:$0xf]
        %v243 = vld [vmem:[%s211 + $0x74] sm:$0x1]
        %v244 = vld [vmem:[%s211 + $0x78] sm:$0xf]
        %v245 = vld [vmem:[%s211 + $0x7c] sm:$0xf]
        %v246 = vld [vmem:[%s211 + $0x80] sm:$0x1]
        %v247 = vld [vmem:[%s211 + $0x84] sm:$0xf]
        %v248 = vld [vmem:[%s211 + $0x88] sm:$0xf]
        %v249 = vld [vmem:[%s211 + $0x8c] sm:$0x1]
        %v250 = vld [vmem:[%s211 + $0x90] sm:$0xf]
        %v251 = vld [vmem:[%s211 + $0x94] sm:$0xf]
        %v252 = vld [vmem:[%s211 + $0x98] sm:$0x1]
        %v253 = vld [vmem:[%s211 + $0x9c] sm:$0xf]
        %v254 = vld [vmem:[%s211 + $0xa0] sm:$0xf]
        %v255 = vld [vmem:[%s211 + $0xa4] sm:$0x1]
        %v256 = vld [vmem:[%s211 + $0xa8] sm:$0xf]
        %v257 = vld [vmem:[%s211 + $0xac] sm:$0xf]
        %v258 = vld [vmem:[%s211 + $0xb0] sm:$0x1]
        %v259 = vld [vmem:[%s211 + $0xb4] sm:$0xf]
        %v260 = vld [vmem:[%s211 + $0xb8] sm:$0xf]
        %v261 = vld [vmem:[%s211 + $0xbc] sm:$0x1]
        %v262 = vld [vmem:[%s211 + $0xc0] sm:$0xf]
        %v263 = vld [vmem:[%s211 + $0xc4] sm:$0xf]
        %v264 = vld [vmem:[%s211 + $0xc8] sm:$0x1]
        %v265 = vld [vmem:[%s211 + $0xcc] sm:$0xf]
        %v266 = vld [vmem:[%s211 + $0xd0] sm:$0xf]
        %v267 = vld [vmem:[%s211 + $0xd4] sm:$0x1]
        %v300 = vunpack.c.l.b16 %v214
        %v301 = vunpack.c.l.b16 %v215
        %v302 = vunpack.c.l.b16 %v217
        %v303 = vunpack.c.l.b16 %v218
        %v304 = vunpack.c.l.b16 %v220
        %v305 = vunpack.c.l.b16 %v221
        %v306 = vunpack.c.l.b16 %v223
        %v307 = vunpack.c.l.b16 %v224
        %v308 = vunpack.c.l.b16 %v226
        %v309 = vunpack.c.l.b16 %v227
        %v310 = vunpack.c.l.b16 %v229
        %v311 = vunpack.c.l.b16 %v230
        %v312 = vunpack.c.l.b16 %v232
        %v313 = vunpack.c.l.b16 %v233
        %v314 = vunpack.c.l.b16 %v235
        %v315 = vunpack.c.l.b16 %v236
        %v316 = vunpack.c.l.b16 %v238
        %v317 = vunpack.c.l.b16 %v239
        %v318 = vunpack.c.l.b16 %v241
        %v319 = vunpack.c.l.b16 %v242
        %v320 = vunpack.c.l.b16 %v244
        %v321 = vunpack.c.l.b16 %v245
        %v322 = vunpack.c.l.b16 %v247
        %v323 = vunpack.c.l.b16 %v248
        %v324 = vunpack.c.l.b16 %v250
        %v325 = vunpack.c.l.b16 %v251
        %v326 = vunpack.c.l.b16 %v253
        %v327 = vunpack.c.l.b16 %v254
        %v328 = vunpack.c.l.b16 %v256
        %v329 = vunpack.c.l.b16 %v257
        %v330 = vunpack.c.l.b16 %v259
        %v331 = vunpack.c.l.b16 %v260
        %v332 = vpack.c.b16 %v301, %v300
        %v333 = vpack.c.b16 %v303, %v302
        %v334 = vpack.c.b16 %v305, %v304
        %v335 = vpack.c.b16 %v307, %v306
        %v336 = vpack.c.b16 %v309, %v308
        %v337 = vpack.c.b16 %v311, %v310
        %v338 = vpack.c.b16 %v313, %v312
        %v339 = vpack.c.b16 %v315, %v314
        %v340 = vpack.c.b16 %v317, %v316
        %v341 = vpack.c.b16 %v319, %v318
        %v342 = vpack.c.b16 %v321, %v320
        %v343 = vpack.c.b16 %v323, %v322
        %v344 = vpack.c.b16 %v325, %v324
        %v345 = vpack.c.b16 %v327, %v326
        %v346 = vpack.c.b16 %v329, %v328
        %v347 = vpack.c.b16 %v331, %v330
        %v364 = vunpack.c.l.b16 %v216
        %v365 = vunpack.c.l.b16 %v219
        %v366 = vunpack.c.l.b16 %v222
        %v367 = vunpack.c.l.b16 %v225
        %v368 = vunpack.c.l.b16 %v228
        %v369 = vunpack.c.l.b16 %v231
        %v370 = vunpack.c.l.b16 %v234
        %v371 = vunpack.c.l.b16 %v237
        %v372 = vunpack.c.l.b16 %v240
        %v373 = vunpack.c.l.b16 %v243
        %v374 = vunpack.c.l.b16 %v246
        %v375 = vunpack.c.l.b16 %v249
        %v376 = vunpack.c.l.b16 %v252
        %v377 = vunpack.c.l.b16 %v255
        %v378 = vunpack.c.l.b16 %v258
        %v379 = vunpack.c.l.b16 %v261
        %v380 = vpack.c.b16 %v364, %v364
        %v381 = vpack.c.b16 %v365, %v365
        %v382 = vpack.c.b16 %v366, %v366
        %v383 = vpack.c.b16 %v367, %v367
        %v384 = vpack.c.b16 %v368, %v368
        %v385 = vpack.c.b16 %v369, %v369
        %v386 = vpack.c.b16 %v370, %v370
        %v387 = vpack.c.b16 %v371, %v371
        %v388 = vpack.c.b16 %v372, %v372
        %v389 = vpack.c.b16 %v373, %v373
        %v390 = vpack.c.b16 %v374, %v374
        %v391 = vpack.c.b16 %v375, %v375
        %v392 = vpack.c.b16 %v376, %v376
        %v393 = vpack.c.b16 %v377, %v377
        %v394 = vpack.c.b16 %v378, %v378
        %v395 = vpack.c.b16 %v379, %v379
        %vm396 = vsmask.f32 7424
        %v398 = vshrl.u32 %v332, 16
        %v400 = vshll.u32 %v332, 16
        %v402 = vrot.slane %v400, 1
        %v403 = vor.u32 %v398, %v402
        %v405 = vshll.u32 %v380, 16
        %v407 = vrot.slane %v405, 1
        %v408 = vsel %vm396, %v403, %v407
        %v410 = vshrl.u32 %v333, 16
        %v412 = vshll.u32 %v333, 16
        %v414 = vrot.slane %v412, 1
        %v415 = vor.u32 %v410, %v414
        %v417 = vshll.u32 %v381, 16
        %v419 = vrot.slane %v417, 1
        %v420 = vsel %vm396, %v415, %v419
        %v422 = vshrl.u32 %v334, 16
        %v424 = vshll.u32 %v334, 16
        %v426 = vrot.slane %v424, 1
        %v427 = vor.u32 %v422, %v426
        %v429 = vshll.u32 %v382, 16
        %v431 = vrot.slane %v429, 1
        %v432 = vsel %vm396, %v427, %v431
        %v434 = vshrl.u32 %v335, 16
        %v436 = vshll.u32 %v335, 16
        %v438 = vrot.slane %v436, 1
        %v439 = vor.u32 %v434, %v438
        %v441 = vshll.u32 %v383, 16
        %v443 = vrot.slane %v441, 1
        %v444 = vsel %vm396, %v439, %v443
        %v446 = vshrl.u32 %v336, 16
        %v448 = vshll.u32 %v336, 16
        %v450 = vrot.slane %v448, 1
        %v451 = vor.u32 %v446, %v450
        %v453 = vshll.u32 %v384, 16
        %v455 = vrot.slane %v453, 1
        %v456 = vsel %vm396, %v451, %v455
        %v458 = vshrl.u32 %v337, 16
        %v460 = vshll.u32 %v337, 16
        %v462 = vrot.slane %v460, 1
        %v463 = vor.u32 %v458, %v462
        %v465 = vshll.u32 %v385, 16
        %v467 = vrot.slane %v465, 1
        %v468 = vsel %vm396, %v463, %v467
        %v470 = vshrl.u32 %v338, 16
        %v472 = vshll.u32 %v338, 16
        %v474 = vrot.slane %v472, 1
        %v475 = vor.u32 %v470, %v474
        %v477 = vshll.u32 %v386, 16
        %v479 = vrot.slane %v477, 1
        %v480 = vsel %vm396, %v475, %v479
        %v482 = vshrl.u32 %v339, 16
        %v484 = vshll.u32 %v339, 16
        %v486 = vrot.slane %v484, 1
        %v487 = vor.u32 %v482, %v486
        %v489 = vshll.u32 %v387, 16
        %v491 = vrot.slane %v489, 1
        %v492 = vsel %vm396, %v487, %v491
        %v494 = vshrl.u32 %v340, 16
        %v496 = vshll.u32 %v340, 16
        %v498 = vrot.slane %v496, 1
        %v499 = vor.u32 %v494, %v498
        %v501 = vshll.u32 %v388, 16
        %v503 = vrot.slane %v501, 1
        %v504 = vsel %vm396, %v499, %v503
        %v506 = vshrl.u32 %v341, 16
        %v508 = vshll.u32 %v341, 16
        %v510 = vrot.slane %v508, 1
        %v511 = vor.u32 %v506, %v510
        %v513 = vshll.u32 %v389, 16
        %v515 = vrot.slane %v513, 1
        %v516 = vsel %vm396, %v511, %v515
        %v518 = vshrl.u32 %v342, 16
        %v520 = vshll.u32 %v342, 16
        %v522 = vrot.slane %v520, 1
        %v523 = vor.u32 %v518, %v522
        %v525 = vshll.u32 %v390, 16
        %v527 = vrot.slane %v525, 1
        %v528 = vsel %vm396, %v523, %v527
        %v530 = vshrl.u32 %v343, 16
        %v532 = vshll.u32 %v343, 16
        %v534 = vrot.slane %v532, 1
        %v535 = vor.u32 %v530, %v534
        %v537 = vshll.u32 %v391, 16
        %v539 = vrot.slane %v537, 1
        %v540 = vsel %vm396, %v535, %v539
        %v542 = vshrl.u32 %v344, 16
        %v544 = vshll.u32 %v344, 16
        %v546 = vrot.slane %v544, 1
        %v547 = vor.u32 %v542, %v546
        %v549 = vshll.u32 %v392, 16
        %v551 = vrot.slane %v549, 1
        %v552 = vsel %vm396, %v547, %v551
        %v554 = vshrl.u32 %v345, 16
        %v556 = vshll.u32 %v345, 16
        %v558 = vrot.slane %v556, 1
        %v559 = vor.u32 %v554, %v558
        %v561 = vshll.u32 %v393, 16
        %v563 = vrot.slane %v561, 1
        %v564 = vsel %vm396, %v559, %v563
        %v566 = vshrl.u32 %v346, 16
        %v568 = vshll.u32 %v346, 16
        %v570 = vrot.slane %v568, 1
        %v571 = vor.u32 %v566, %v570
        %v573 = vshll.u32 %v394, 16
        %v575 = vrot.slane %v573, 1
        %v576 = vsel %vm396, %v571, %v575
        %v578 = vshrl.u32 %v347, 16
        %v580 = vshll.u32 %v347, 16
        %v582 = vrot.slane %v580, 1
        %v583 = vor.u32 %v578, %v582
        %v585 = vshll.u32 %v395, 16
        %v587 = vrot.slane %v585, 1
        %v588 = vsel %vm396, %v583, %v587
        %589 = vrot.lane.b32.xlu0 %v408, 4
        %v590 = vpop.permute.xlu0 %589
        %591 = vrot.lane.b32.xlu0 %v420, 4
        %v592 = vpop.permute.xlu0 %591
        %593 = vrot.lane.b32.xlu0 %v432, 4
        %v594 = vpop.permute.xlu0 %593
        %595 = vrot.lane.b32.xlu0 %v444, 4
        %v596 = vpop.permute.xlu0 %595
        %597 = vrot.lane.b32.xlu0 %v456, 4
        %v598 = vpop.permute.xlu0 %597
        %599 = vrot.lane.b32.xlu0 %v468, 4
        %v600 = vpop.permute.xlu0 %599
        %601 = vrot.lane.b32.xlu0 %v480, 4
        %v602 = vpop.permute.xlu0 %601
        %603 = vrot.lane.b32.xlu0 %v492, 4
        %v604 = vpop.permute.xlu0 %603
        %605 = vrot.lane.b32.xlu0 %v504, 4
        %v606 = vpop.permute.xlu0 %605
        %607 = vrot.lane.b32.xlu0 %v516, 4
        %v608 = vpop.permute.xlu0 %607
        %609 = vrot.lane.b32.xlu0 %v528, 4
        %v610 = vpop.permute.xlu0 %609
        %611 = vrot.lane.b32.xlu0 %v540, 4
        %v612 = vpop.permute.xlu0 %611
        %613 = vrot.lane.b32.xlu0 %v552, 4
        %v614 = vpop.permute.xlu0 %613
        %615 = vrot.lane.b32.xlu0 %v564, 4
        %v616 = vpop.permute.xlu0 %615
        %617 = vrot.lane.b32.xlu0 %v576, 4
        %v618 = vpop.permute.xlu0 %617
        %619 = vrot.lane.b32.xlu0 %v588, 4
        %v620 = vpop.permute.xlu0 %619
        %vm621 = vcmask 1046528
        %v622 = vrot.slane %v332, 1
        %v623 = vrot.slane %v380, 1
        %v624 = vsel %vm621, %v622, %v623
        %v625 = vrot.slane %v333, 1
        %v626 = vrot.slane %v381, 1
        %v627 = vsel %vm621, %v625, %v626
        %v628 = vrot.slane %v334, 1
        %v629 = vrot.slane %v382, 1
        %v630 = vsel %vm621, %v628, %v629
        %v631 = vrot.slane %v335, 1
        %v632 = vrot.slane %v383, 1
        %v633 = vsel %vm621, %v631, %v632
        %v634 = vrot.slane %v336, 1
        %v635 = vrot.slane %v384, 1
        %v636 = vsel %vm621, %v634, %v635
        %v637 = vrot.slane %v337, 1
        %v638 = vrot.slane %v385, 1
        %v639 = vsel %vm621, %v637, %v638
        %v640 = vrot.slane %v338, 1
        %v641 = vrot.slane %v386, 1
        %v642 = vsel %vm621, %v640, %v641
        %v643 = vrot.slane %v339, 1
        %v644 = vrot.slane %v387, 1
        %v645 = vsel %vm621, %v643, %v644
        %v646 = vrot.slane %v340, 1
        %v647 = vrot.slane %v388, 1
        %v648 = vsel %vm621, %v646, %v647
        %v649 = vrot.slane %v341, 1
        %v650 = vrot.slane %v389, 1
        %v651 = vsel %vm621, %v649, %v650
        %v652 = vrot.slane %v342, 1
        %v653 = vrot.slane %v390, 1
        %v654 = vsel %vm621, %v652, %v653
        %v655 = vrot.slane %v343, 1
        %v656 = vrot.slane %v391, 1
        %v657 = vsel %vm621, %v655, %v656
        %v658 = vrot.slane %v344, 1
        %v659 = vrot.slane %v392, 1
        %v660 = vsel %vm621, %v658, %v659
        %v661 = vrot.slane %v345, 1
        %v662 = vrot.slane %v393, 1
        %v663 = vsel %vm621, %v661, %v662
        %v664 = vrot.slane %v346, 1
        %v665 = vrot.slane %v394, 1
        %v666 = vsel %vm621, %v664, %v665
        %v667 = vrot.slane %v347, 1
        %v668 = vrot.slane %v395, 1
        %v669 = vsel %vm621, %v667, %v668
        %670 = vrot.lane.b32.xlu0 %v624, 8
        %v671 = vpop.permute.xlu0 %670
        %672 = vrot.lane.b32.xlu0 %v627, 8
        %v673 = vpop.permute.xlu0 %672
        %674 = vrot.lane.b32.xlu0 %v630, 8
        %v675 = vpop.permute.xlu0 %674
        %676 = vrot.lane.b32.xlu0 %v633, 8
        %v677 = vpop.permute.xlu0 %676
        %678 = vrot.lane.b32.xlu0 %v636, 8
        %v679 = vpop.permute.xlu0 %678
        %680 = vrot.lane.b32.xlu0 %v639, 8
        %v681 = vpop.permute.xlu0 %680
        %682 = vrot.lane.b32.xlu0 %v642, 8
        %v683 = vpop.permute.xlu0 %682
        %684 = vrot.lane.b32.xlu0 %v645, 8
        %v685 = vpop.permute.xlu0 %684
        %686 = vrot.lane.b32.xlu0 %v648, 8
        %v687 = vpop.permute.xlu0 %686
        %688 = vrot.lane.b32.xlu0 %v651, 8
        %v689 = vpop.permute.xlu0 %688
        %690 = vrot.lane.b32.xlu0 %v654, 8
        %v691 = vpop.permute.xlu0 %690
        %692 = vrot.lane.b32.xlu0 %v657, 8
        %v693 = vpop.permute.xlu0 %692
        %694 = vrot.lane.b32.xlu0 %v660, 8
        %v695 = vpop.permute.xlu0 %694
        %696 = vrot.lane.b32.xlu0 %v663, 8
        %v697 = vpop.permute.xlu0 %696
        %698 = vrot.lane.b32.xlu0 %v666, 8
        %v699 = vpop.permute.xlu0 %698
        %700 = vrot.lane.b32.xlu0 %v669, 8
        %v701 = vpop.permute.xlu0 %700
        %v704 = vunpack.c.l.b16 %v262
        %v705 = vunpack.c.l.b16 %v263
        %v706 = vpack.c.b16 %v705, %v704
        %707 = vrot.lane.b32.xlu0 %v333, 12
        %v708 = vpop.permute.xlu0 %707
        %709 = vrot.lane.b32.xlu0 %v334, 12
        %v710 = vpop.permute.xlu0 %709
        %711 = vrot.lane.b32.xlu0 %v335, 12
        %v712 = vpop.permute.xlu0 %711
        %713 = vrot.lane.b32.xlu0 %v336, 12
        %v714 = vpop.permute.xlu0 %713
        %715 = vrot.lane.b32.xlu0 %v337, 12
        %v716 = vpop.permute.xlu0 %715
        %717 = vrot.lane.b32.xlu0 %v338, 12
        %v718 = vpop.permute.xlu0 %717
        %719 = vrot.lane.b32.xlu0 %v339, 12
        %v720 = vpop.permute.xlu0 %719
        %721 = vrot.lane.b32.xlu0 %v340, 12
        %v722 = vpop.permute.xlu0 %721
        %723 = vrot.lane.b32.xlu0 %v341, 12
        %v724 = vpop.permute.xlu0 %723
        %725 = vrot.lane.b32.xlu0 %v342, 12
        %v726 = vpop.permute.xlu0 %725
        %727 = vrot.lane.b32.xlu0 %v343, 12
        %v728 = vpop.permute.xlu0 %727
        %729 = vrot.lane.b32.xlu0 %v344, 12
        %v730 = vpop.permute.xlu0 %729
        %731 = vrot.lane.b32.xlu0 %v345, 12
        %v732 = vpop.permute.xlu0 %731
        %733 = vrot.lane.b32.xlu0 %v346, 12
        %v734 = vpop.permute.xlu0 %733
        %735 = vrot.lane.b32.xlu0 %v347, 12
        %v736 = vpop.permute.xlu0 %735
        %737 = vrot.lane.b32.xlu0 %v706, 12
        %v738 = vpop.permute.xlu0 %737
        %v740 = vunpack.c.l.b16 %v264
        %v741 = vpack.c.b16 %v740, %v740
        %v743 = vshrl.u32 %v706, 16
        %v745 = vshll.u32 %v706, 16
        %v747 = vrot.slane %v745, 1
        %v748 = vor.u32 %v743, %v747
        %v750 = vshll.u32 %v741, 16
        %v752 = vrot.slane %v750, 1
        %v753 = vsel %vm396, %v748, %v752
        %754 = vrot.lane.b32.xlu0 %v420, 16
        %v755 = vpop.permute.xlu0 %754
        %756 = vrot.lane.b32.xlu0 %v432, 16
        %v757 = vpop.permute.xlu0 %756
        %758 = vrot.lane.b32.xlu0 %v444, 16
        %v759 = vpop.permute.xlu0 %758
        %760 = vrot.lane.b32.xlu0 %v456, 16
        %v761 = vpop.permute.xlu0 %760
        %762 = vrot.lane.b32.xlu0 %v468, 16
        %v763 = vpop.permute.xlu0 %762
        %764 = vrot.lane.b32.xlu0 %v480, 16
        %v765 = vpop.permute.xlu0 %764
        %766 = vrot.lane.b32.xlu0 %v492, 16
        %v767 = vpop.permute.xlu0 %766
        %768 = vrot.lane.b32.xlu0 %v504, 16
        %v769 = vpop.permute.xlu0 %768
        %770 = vrot.lane.b32.xlu0 %v516, 16
        %v771 = vpop.permute.xlu0 %770
        %772 = vrot.lane.b32.xlu0 %v528, 16
        %v773 = vpop.permute.xlu0 %772
        %774 = vrot.lane.b32.xlu0 %v540, 16
        %v775 = vpop.permute.xlu0 %774
        %776 = vrot.lane.b32.xlu0 %v552, 16
        %v777 = vpop.permute.xlu0 %776
        %778 = vrot.lane.b32.xlu0 %v564, 16
        %v779 = vpop.permute.xlu0 %778
        %780 = vrot.lane.b32.xlu0 %v576, 16
        %v781 = vpop.permute.xlu0 %780
        %782 = vrot.lane.b32.xlu0 %v588, 16
        %v783 = vpop.permute.xlu0 %782
        %784 = vrot.lane.b32.xlu0 %v753, 16
        %v785 = vpop.permute.xlu0 %784
        %v786 = vrot.slane %v706, 1
        %v787 = vrot.slane %v741, 1
        %v788 = vsel %vm621, %v786, %v787
        %789 = vrot.lane.b32.xlu0 %v627, 20
        %v790 = vpop.permute.xlu0 %789
        %791 = vrot.lane.b32.xlu0 %v630, 20
        %v792 = vpop.permute.xlu0 %791
        %793 = vrot.lane.b32.xlu0 %v633, 20
        %v794 = vpop.permute.xlu0 %793
        %795 = vrot.lane.b32.xlu0 %v636, 20
        %v796 = vpop.permute.xlu0 %795
        %797 = vrot.lane.b32.xlu0 %v639, 20
        %v798 = vpop.permute.xlu0 %797
        %799 = vrot.lane.b32.xlu0 %v642, 20
        %v800 = vpop.permute.xlu0 %799
        %801 = vrot.lane.b32.xlu0 %v645, 20
        %v802 = vpop.permute.xlu0 %801
        %803 = vrot.lane.b32.xlu0 %v648, 20
        %v804 = vpop.permute.xlu0 %803
        %805 = vrot.lane.b32.xlu0 %v651, 20
        %v806 = vpop.permute.xlu0 %805
        %807 = vrot.lane.b32.xlu0 %v654, 20
        %v808 = vpop.permute.xlu0 %807
        %809 = vrot.lane.b32.xlu0 %v657, 20
        %v810 = vpop.permute.xlu0 %809
        %811 = vrot.lane.b32.xlu0 %v660, 20
        %v812 = vpop.permute.xlu0 %811
        %813 = vrot.lane.b32.xlu0 %v663, 20
        %v814 = vpop.permute.xlu0 %813
        %815 = vrot.lane.b32.xlu0 %v666, 20
        %v816 = vpop.permute.xlu0 %815
        %817 = vrot.lane.b32.xlu0 %v669, 20
        %v818 = vpop.permute.xlu0 %817
        %819 = vrot.lane.b32.xlu0 %v788, 20
        %v820 = vpop.permute.xlu0 %819
        %v823 = vunpack.c.l.b16 %v265
        %v824 = vunpack.c.l.b16 %v266
        %v825 = vpack.c.b16 %v824, %v823
        %826 = vrot.lane.b32.xlu0 %v334, 24
        %v827 = vpop.permute.xlu0 %826
        %828 = vrot.lane.b32.xlu0 %v335, 24
        %v829 = vpop.permute.xlu0 %828
        %830 = vrot.lane.b32.xlu0 %v336, 24
        %v831 = vpop.permute.xlu0 %830
        %832 = vrot.lane.b32.xlu0 %v337, 24
        %v833 = vpop.permute.xlu0 %832
        %834 = vrot.lane.b32.xlu0 %v338, 24
        %v835 = vpop.permute.xlu0 %834
        %836 = vrot.lane.b32.xlu0 %v339, 24
        %v837 = vpop.permute.xlu0 %836
        %838 = vrot.lane.b32.xlu0 %v340, 24
        %v839 = vpop.permute.xlu0 %838
        %840 = vrot.lane.b32.xlu0 %v341, 24
        %v841 = vpop.permute.xlu0 %840
        %842 = vrot.lane.b32.xlu0 %v342, 24
        %v843 = vpop.permute.xlu0 %842
        %844 = vrot.lane.b32.xlu0 %v343, 24
        %v845 = vpop.permute.xlu0 %844
        %846 = vrot.lane.b32.xlu0 %v344, 24
        %v847 = vpop.permute.xlu0 %846
        %848 = vrot.lane.b32.xlu0 %v345, 24
        %v849 = vpop.permute.xlu0 %848
        %850 = vrot.lane.b32.xlu0 %v346, 24
        %v851 = vpop.permute.xlu0 %850
        %852 = vrot.lane.b32.xlu0 %v347, 24
        %v853 = vpop.permute.xlu0 %852
        %854 = vrot.lane.b32.xlu0 %v706, 24
        %v855 = vpop.permute.xlu0 %854
        %856 = vrot.lane.b32.xlu0 %v825, 24
        %v857 = vpop.permute.xlu0 %856
        %v859 = vunpack.c.l.b16 %v267
        %v860 = vpack.c.b16 %v859, %v859
        %v862 = vshrl.u32 %v825, 16
        %v864 = vshll.u32 %v825, 16
        %v866 = vrot.slane %v864, 1
        %v867 = vor.u32 %v862, %v866
        %v869 = vshll.u32 %v860, 16
        %v871 = vrot.slane %v869, 1
        %v872 = vsel %vm396, %v867, %v871
        %873 = vrot.lane.b32.xlu0 %v432, 28
        %v874 = vpop.permute.xlu0 %873
        %875 = vrot.lane.b32.xlu0 %v444, 28
        %v876 = vpop.permute.xlu0 %875
        %877 = vrot.lane.b32.xlu0 %v456, 28
        %v878 = vpop.permute.xlu0 %877
        %879 = vrot.lane.b32.xlu0 %v468, 28
        %v880 = vpop.permute.xlu0 %879
        %881 = vrot.lane.b32.xlu0 %v480, 28
        %v882 = vpop.permute.xlu0 %881
        %883 = vrot.lane.b32.xlu0 %v492, 28
        %v884 = vpop.permute.xlu0 %883
        %885 = vrot.lane.b32.xlu0 %v504, 28
        %v886 = vpop.permute.xlu0 %885
        %887 = vrot.lane.b32.xlu0 %v516, 28
        %v888 = vpop.permute.xlu0 %887
        %889 = vrot.lane.b32.xlu0 %v528, 28
        %v890 = vpop.permute.xlu0 %889
        %891 = vrot.lane.b32.xlu0 %v540, 28
        %v892 = vpop.permute.xlu0 %891
        %893 = vrot.lane.b32.xlu0 %v552, 28
        %v894 = vpop.permute.xlu0 %893
        %895 = vrot.lane.b32.xlu0 %v564, 28
        %v896 = vpop.permute.xlu0 %895
        %897 = vrot.lane.b32.xlu0 %v576, 28
        %v898 = vpop.permute.xlu0 %897
        %899 = vrot.lane.b32.xlu0 %v588, 28
        %v900 = vpop.permute.xlu0 %899
        %901 = vrot.lane.b32.xlu0 %v753, 28
        %v902 = vpop.permute.xlu0 %901
        %903 = vrot.lane.b32.xlu0 %v872, 28
        %v904 = vpop.permute.xlu0 %903
        %v905 = vrot.slane %v825, 1
        %v906 = vrot.slane %v860, 1
        %v907 = vsel %vm621, %v905, %v906
        %908 = vrot.lane.b32.xlu0 %v630, 32
        %v909 = vpop.permute.xlu0 %908
        %910 = vrot.lane.b32.xlu0 %v633, 32
        %v911 = vpop.permute.xlu0 %910
        %912 = vrot.lane.b32.xlu0 %v636, 32
        %v913 = vpop.permute.xlu0 %912
        %914 = vrot.lane.b32.xlu0 %v639, 32
        %v915 = vpop.permute.xlu0 %914
        %916 = vrot.lane.b32.xlu0 %v642, 32
        %v917 = vpop.permute.xlu0 %916
        %918 = vrot.lane.b32.xlu0 %v645, 32
        %v919 = vpop.permute.xlu0 %918
        %920 = vrot.lane.b32.xlu0 %v648, 32
        %v921 = vpop.permute.xlu0 %920
        %922 = vrot.lane.b32.xlu0 %v651, 32
        %v923 = vpop.permute.xlu0 %922
        %924 = vrot.lane.b32.xlu0 %v654, 32
        %v925 = vpop.permute.xlu0 %924
        %926 = vrot.lane.b32.xlu0 %v657, 32
        %v927 = vpop.permute.xlu0 %926
        %928 = vrot.lane.b32.xlu0 %v660, 32
        %v929 = vpop.permute.xlu0 %928
        %930 = vrot.lane.b32.xlu0 %v663, 32
        %v931 = vpop.permute.xlu0 %930
        %932 = vrot.lane.b32.xlu0 %v666, 32
        %v933 = vpop.permute.xlu0 %932
        %934 = vrot.lane.b32.xlu0 %v669, 32
        %v935 = vpop.permute.xlu0 %934
        %936 = vrot.lane.b32.xlu0 %v788, 32
        %v937 = vpop.permute.xlu0 %936
        %938 = vrot.lane.b32.xlu0 %v907, 32
        %v939 = vpop.permute.xlu0 %938
        %vm940 = vcmask 31744
        %v942 = vsel %vm940, %v332, %v590
        %v944 = vsel %vm940, %v333, %v592
        %v946 = vsel %vm940, %v334, %v594
        %v948 = vsel %vm940, %v335, %v596
        %v950 = vsel %vm940, %v336, %v598
        %v952 = vsel %vm940, %v337, %v600
        %v954 = vsel %vm940, %v338, %v602
        %v956 = vsel %vm940, %v339, %v604
        %v958 = vsel %vm940, %v340, %v606
        %v960 = vsel %vm940, %v341, %v608
        %v962 = vsel %vm940, %v342, %v610
        %v964 = vsel %vm940, %v343, %v612
        %v966 = vsel %vm940, %v344, %v614
        %v968 = vsel %vm940, %v345, %v616
        %v970 = vsel %vm940, %v346, %v618
        %v972 = vsel %vm940, %v347, %v620
        %vm973 = vcmask 64512
        %v975 = vsel %vm973, %v942, %v671
        %v977 = vsel %vm973, %v944, %v673
        %v979 = vsel %vm973, %v946, %v675
        %v981 = vsel %vm973, %v948, %v677
        %v983 = vsel %vm973, %v950, %v679
        %v985 = vsel %vm973, %v952, %v681
        %v987 = vsel %vm973, %v954, %v683
        %v989 = vsel %vm973, %v956, %v685
        %v991 = vsel %vm973, %v958, %v687
        %v993 = vsel %vm973, %v960, %v689
        %v995 = vsel %vm973, %v962, %v691
        %v997 = vsel %vm973, %v964, %v693
        %v999 = vsel %vm973, %v966, %v695
        %v1001 = vsel %vm973, %v968, %v697
        %v1003 = vsel %vm973, %v970, %v699
        %v1005 = vsel %vm973, %v972, %v701
        %vm1006 = vcmask 97280
        %v1008 = vsel %vm1006, %v975, %v708
        %v1010 = vsel %vm1006, %v977, %v710
        %v1012 = vsel %vm1006, %v979, %v712
        %v1014 = vsel %vm1006, %v981, %v714
        %v1016 = vsel %vm1006, %v983, %v716
        %v1018 = vsel %vm1006, %v985, %v718
        %v1020 = vsel %vm1006, %v987, %v720
        %v1022 = vsel %vm1006, %v989, %v722
        %v1024 = vsel %vm1006, %v991, %v724
        %v1026 = vsel %vm1006, %v993, %v726
        %v1028 = vsel %vm1006, %v995, %v728
        %v1030 = vsel %vm1006, %v997, %v730
        %v1032 = vsel %vm1006, %v999, %v732
        %v1034 = vsel %vm1006, %v1001, %v734
        %v1036 = vsel %vm1006, %v1003, %v736
        %v1038 = vsel %vm1006, %v1005, %v738
        %vm1039 = vcmask 130048
        %v1041 = vsel %vm1039, %v1008, %v755
        %v1043 = vsel %vm1039, %v1010, %v757
        %v1045 = vsel %vm1039, %v1012, %v759
        %v1047 = vsel %vm1039, %v1014, %v761
        %v1049 = vsel %vm1039, %v1016, %v763
        %v1051 = vsel %vm1039, %v1018, %v765
        %v1053 = vsel %vm1039, %v1020, %v767
        %v1055 = vsel %vm1039, %v1022, %v769
        %v1057 = vsel %vm1039, %v1024, %v771
        %v1059 = vsel %vm1039, %v1026, %v773
        %v1061 = vsel %vm1039, %v1028, %v775
        %v1063 = vsel %vm1039, %v1030, %v777
        %v1065 = vsel %vm1039, %v1032, %v779
        %v1067 = vsel %vm1039, %v1034, %v781
        %v1069 = vsel %vm1039, %v1036, %v783
        %v1071 = vsel %vm1039, %v1038, %v785
        %vm1072 = vcmask 162816
        %v1074 = vsel %vm1072, %v1041, %v790
        %v1076 = vsel %vm1072, %v1043, %v792
        %v1078 = vsel %vm1072, %v1045, %v794
        %v1080 = vsel %vm1072, %v1047, %v796
        %v1082 = vsel %vm1072, %v1049, %v798
        %v1084 = vsel %vm1072, %v1051, %v800
        %v1086 = vsel %vm1072, %v1053, %v802
        %v1088 = vsel %vm1072, %v1055, %v804
        %v1090 = vsel %vm1072, %v1057, %v806
        %v1092 = vsel %vm1072, %v1059, %v808
        %v1094 = vsel %vm1072, %v1061, %v810
        %v1096 = vsel %vm1072, %v1063, %v812
        %v1098 = vsel %vm1072, %v1065, %v814
        %v1100 = vsel %vm1072, %v1067, %v816
        %v1102 = vsel %vm1072, %v1069, %v818
        %v1104 = vsel %vm1072, %v1071, %v820
        %vm1105 = vcmask 195584
        %v1107 = vsel %vm1105, %v1074, %v827
        %v1109 = vsel %vm1105, %v1076, %v829
        %v1111 = vsel %vm1105, %v1078, %v831
        %v1113 = vsel %vm1105, %v1080, %v833
        %v1115 = vsel %vm1105, %v1082, %v835
        %v1117 = vsel %vm1105, %v1084, %v837
        %v1119 = vsel %vm1105, %v1086, %v839
        %v1121 = vsel %vm1105, %v1088, %v841
        %v1123 = vsel %vm1105, %v1090, %v843
        %v1125 = vsel %vm1105, %v1092, %v845
        %v1127 = vsel %vm1105, %v1094, %v847
        %v1129 = vsel %vm1105, %v1096, %v849
        %v1131 = vsel %vm1105, %v1098, %v851
        %v1133 = vsel %vm1105, %v1100, %v853
        %v1135 = vsel %vm1105, %v1102, %v855
        %v1137 = vsel %vm1105, %v1104, %v857
        %vm1138 = vcmask 228352
        %v1140 = vsel %vm1138, %v1107, %v874
        %v1142 = vsel %vm1138, %v1109, %v876
        %v1144 = vsel %vm1138, %v1111, %v878
        %v1146 = vsel %vm1138, %v1113, %v880
        %v1148 = vsel %vm1138, %v1115, %v882
        %v1150 = vsel %vm1138, %v1117, %v884
        %v1152 = vsel %vm1138, %v1119, %v886
        %v1154 = vsel %vm1138, %v1121, %v888
        %v1156 = vsel %vm1138, %v1123, %v890
        %v1158 = vsel %vm1138, %v1125, %v892
        %v1160 = vsel %vm1138, %v1127, %v894
        %v1162 = vsel %vm1138, %v1129, %v896
        %v1164 = vsel %vm1138, %v1131, %v898
        %v1166 = vsel %vm1138, %v1133, %v900
        %v1168 = vsel %vm1138, %v1135, %v902
        %v1170 = vsel %vm1138, %v1137, %v904
        %vm1171 = vcmask 261120
        %v1173 = vsel %vm1171, %v1140, %v909
        %v1175 = vsel %vm1171, %v1142, %v911
        %v1177 = vsel %vm1171, %v1144, %v913
        %v1179 = vsel %vm1171, %v1146, %v915
        %v1181 = vsel %vm1171, %v1148, %v917
        %v1183 = vsel %vm1171, %v1150, %v919
        %v1185 = vsel %vm1171, %v1152, %v921
        %v1187 = vsel %vm1171, %v1154, %v923
        %v1189 = vsel %vm1171, %v1156, %v925
        %v1191 = vsel %vm1171, %v1158, %v927
        %v1193 = vsel %vm1171, %v1160, %v929
        %v1195 = vsel %vm1171, %v1162, %v931
        %v1197 = vsel %vm1171, %v1164, %v933
        %v1199 = vsel %vm1171, %v1166, %v935
        %v1201 = vsel %vm1171, %v1168, %v937
        %v1203 = vsel %vm1171, %v1170, %v939
        %v1204 = vld [vmem:[%s1] sm:$0xf]
        %v1205 = vld [vmem:[%s1 + $0x4] sm:$0xf]
        %v1206 = vld [vmem:[%s1 + $0x8] sm:$0xf]
        %v1207 = vld [vmem:[%s1 + $0xc] sm:$0xf]
        %v1208 = vld [vmem:[%s1 + $0x10] sm:$0x3]
        %v1214 = vunpack.c.l.b16 %v1204
        %v1215 = vunpack.c.l.b16 %v1205
        %v1216 = vunpack.c.l.b16 %v1206
        %v1217 = vunpack.c.l.b16 %v1207
        %v1218 = vunpack.c.l.b16 %v1208
        %v1219 = vpack.c.b16 %v1215, %v1214
        %v1220 = vpack.c.b16 %v1217, %v1216
        %v1221 = vpack.c.b16 %v1218, %v1218
        %vm1224 = vcmask 293888
        %v1225 = vsel %vm1224, %v1173, 0
        %v1227 = vsel %vm1224, %v1175, 0
        %v1229 = vsel %vm1224, %v1177, 0
        %v1231 = vsel %vm1224, %v1179, 0
        %v1233 = vsel %vm1224, %v1181, 0
        %v1235 = vsel %vm1224, %v1183, 0
        %v1237 = vsel %vm1224, %v1185, 0
        %v1239 = vsel %vm1224, %v1187, 0
        %v1241 = vsel %vm1224, %v1189, 0
        %v1243 = vsel %vm1224, %v1191, 0
        %v1245 = vsel %vm1224, %v1193, 0
        %v1247 = vsel %vm1224, %v1195, 0
        %v1249 = vsel %vm1224, %v1197, 0
        %v1251 = vsel %vm1224, %v1199, 0
        %v1253 = vsel %vm1224, %v1201, 0
        %v1255 = vsel %vm1224, %v1203, 0
        %vm1257 = vcmask 1041408
        %v1259 = vsel %vm1257, %v1221, 0
        %1261 = vmatprep.subr.bf16.mxu0 0
        %1262 = vmatpush1.bf16.msra.mxu0 0
        %1263 = vmatprep.subr.bf16.mxu0 0
        %1264 = vmatpush1.bf16.msra.mxu0 0
        %1265 = vmatprep.subr.bf16.mxu0 0
        %1266 = vmatpush1.bf16.msra.mxu0 0
        %1267 = vmatprep.subr.bf16.mxu0 0
        %1268 = vmatpush1.bf16.msra.mxu0 0
        %1269 = vmatprep.subr.bf16.mxu0 0
        %1270 = vmatpush1.bf16.msra.mxu0 0
        %1271 = vmatprep.subr.bf16.mxu0 0
        %1272 = vmatpush1.bf16.msra.mxu0 %v1259
        %1273 = vmatprep.subr.bf16.mxu0 0
        %1274 = vmatpush1.bf16.msra.mxu0 %v1220
        %1275 = vmatprep.subr.bf16.mxu0 0
        %1276 = vmatpush1.bf16.msra.mxu0 %v1219
        %1277 = vmatprep.subr.bf16.mxu0 0
        %1278 = vmatpush2.bf16.msra.mxu0 0
        %1279 = vmatprep.subr.bf16.mxu0 0
        %1280 = vmatpush2.bf16.msra.mxu0 0
        %1281 = vmatprep.subr.bf16.mxu0 0
        %1282 = vmatpush2.bf16.msra.mxu0 0
        %1283 = vmatprep.subr.bf16.mxu0 0
        %1284 = vmatpush2.bf16.msra.mxu0 0
        %1285 = vmatprep.subr.bf16.mxu0 0
        %1286 = vmatpush2.bf16.msra.mxu0 0
        %1287 = vmatprep.subr.bf16.mxu0 0
        %1288 = vmatpush2.bf16.msra.mxu0 0
        %1289 = vmatprep.subr.bf16.mxu0 0
        %1290 = vmatpush2.bf16.msra.mxu0 0
        %1291 = vmatprep.subr.bf16.mxu0 0
        %1292 = vmatpush2.bf16.msra.mxu0 0
        %1293 = vmatprep.mubr.bf16.mxu0 0
        %1294 = vmatmul.mubr.bf16.gmra.mxu0 %v1225
        %v1295 = vpop.f32.mrf.mxu0
        %v1296 = vadd.f32 0.0, %v1295
        %v1297 = vpop.f32.mrf.mxu0
        %v1298 = vpop.f32.mrf.mxu0
        %v1299 = vadd.f32 0.0, %v1298
        %v1300 = vpop.f32.mrf.mxu0
        %1301 = vmatprep.mubr.bf16.mxu0 0
        %1302 = vmatmul.mubr.bf16.gmra.mxu0 %v1227
        %v1303 = vpop.f32.mrf.mxu0
        %v1304 = vadd.f32 0.0, %v1303
        %v1305 = vpop.f32.mrf.mxu0
        %v1306 = vpop.f32.mrf.mxu0
        %v1307 = vadd.f32 0.0, %v1306
        %v1308 = vpop.f32.mrf.mxu0
        %1309 = vmatprep.mubr.bf16.mxu0 0
        %1310 = vmatmul.mubr.bf16.gmra.mxu0 %v1229
        %v1311 = vpop.f32.mrf.mxu0
        %v1312 = vadd.f32 0.0, %v1311
        %v1313 = vpop.f32.mrf.mxu0
        %v1314 = vpop.f32.mrf.mxu0
        %v1315 = vadd.f32 0.0, %v1314
        %v1316 = vpop.f32.mrf.mxu0
        %1317 = vmatprep.mubr.bf16.mxu0 0
        %1318 = vmatmul.mubr.bf16.gmra.mxu0 %v1231
        %v1319 = vpop.f32.mrf.mxu0
        %v1320 = vadd.f32 0.0, %v1319
        %v1321 = vpop.f32.mrf.mxu0
        %v1322 = vpop.f32.mrf.mxu0
        %v1323 = vadd.f32 0.0, %v1322
        %v1324 = vpop.f32.mrf.mxu0
        %1325 = vmatprep.mubr.bf16.mxu0 0
        %1326 = vmatmul.mubr.bf16.gmra.mxu0 %v1233
        %v1327 = vpop.f32.mrf.mxu0
        %v1328 = vadd.f32 0.0, %v1327
        %v1329 = vpop.f32.mrf.mxu0
        %v1330 = vpop.f32.mrf.mxu0
        %v1331 = vadd.f32 0.0, %v1330
        %v1332 = vpop.f32.mrf.mxu0
        %1333 = vmatprep.mubr.bf16.mxu0 0
        %1334 = vmatmul.mubr.bf16.gmra.mxu0 %v1235
        %v1335 = vpop.f32.mrf.mxu0
        %v1336 = vadd.f32 0.0, %v1335
        %v1337 = vpop.f32.mrf.mxu0
        %v1338 = vpop.f32.mrf.mxu0
        %v1339 = vadd.f32 0.0, %v1338
        %v1340 = vpop.f32.mrf.mxu0
        %1341 = vmatprep.mubr.bf16.mxu0 0
        %1342 = vmatmul.mubr.bf16.gmra.mxu0 %v1237
        %v1343 = vpop.f32.mrf.mxu0
        %v1344 = vadd.f32 0.0, %v1343
        %v1345 = vpop.f32.mrf.mxu0
        %v1346 = vpop.f32.mrf.mxu0
        %v1347 = vadd.f32 0.0, %v1346
        %v1348 = vpop.f32.mrf.mxu0
        %1349 = vmatprep.mubr.bf16.mxu0 0
        %1350 = vmatmul.mubr.bf16.gmra.mxu0 %v1239
        %v1351 = vpop.f32.mrf.mxu0
        %v1352 = vadd.f32 0.0, %v1351
        %v1353 = vpop.f32.mrf.mxu0
        %v1354 = vpop.f32.mrf.mxu0
        %v1355 = vadd.f32 0.0, %v1354
        %v1356 = vpop.f32.mrf.mxu0
        %1357 = vmatprep.mubr.bf16.mxu0 0
        %1358 = vmatmul.mubr.bf16.gmra.mxu0 %v1241
        %v1359 = vpop.f32.mrf.mxu0
        %v1360 = vadd.f32 0.0, %v1359
        %v1361 = vpop.f32.mrf.mxu0
        %v1362 = vpop.f32.mrf.mxu0
        %v1363 = vadd.f32 0.0, %v1362
        %v1364 = vpop.f32.mrf.mxu0
        %1365 = vmatprep.mubr.bf16.mxu0 0
        %1366 = vmatmul.mubr.bf16.gmra.mxu0 %v1243
        %v1367 = vpop.f32.mrf.mxu0
        %v1368 = vadd.f32 0.0, %v1367
        %v1369 = vpop.f32.mrf.mxu0
        %v1370 = vpop.f32.mrf.mxu0
        %v1371 = vadd.f32 0.0, %v1370
        %v1372 = vpop.f32.mrf.mxu0
        %1373 = vmatprep.mubr.bf16.mxu0 0
        %1374 = vmatmul.mubr.bf16.gmra.mxu0 %v1245
        %v1375 = vpop.f32.mrf.mxu0
        %v1376 = vadd.f32 0.0, %v1375
        %v1377 = vpop.f32.mrf.mxu0
        %v1378 = vpop.f32.mrf.mxu0
        %v1379 = vadd.f32 0.0, %v1378
        %v1380 = vpop.f32.mrf.mxu0
        %1381 = vmatprep.mubr.bf16.mxu0 0
        %1382 = vmatmul.mubr.bf16.gmra.mxu0 %v1247
        %v1383 = vpop.f32.mrf.mxu0
        %v1384 = vadd.f32 0.0, %v1383
        %v1385 = vpop.f32.mrf.mxu0
        %v1386 = vpop.f32.mrf.mxu0
        %v1387 = vadd.f32 0.0, %v1386
        %v1388 = vpop.f32.mrf.mxu0
        %1389 = vmatprep.mubr.bf16.mxu0 0
        %1390 = vmatmul.mubr.bf16.gmra.mxu0 %v1249
        %v1391 = vpop.f32.mrf.mxu0
        %v1392 = vadd.f32 0.0, %v1391
        %v1393 = vpop.f32.mrf.mxu0
        %v1394 = vpop.f32.mrf.mxu0
        %v1395 = vadd.f32 0.0, %v1394
        %v1396 = vpop.f32.mrf.mxu0
        %1397 = vmatprep.mubr.bf16.mxu0 0
        %1398 = vmatmul.mubr.bf16.gmra.mxu0 %v1251
        %v1399 = vpop.f32.mrf.mxu0
        %v1400 = vadd.f32 0.0, %v1399
        %v1401 = vpop.f32.mrf.mxu0
        %v1402 = vpop.f32.mrf.mxu0
        %v1403 = vadd.f32 0.0, %v1402
        %v1404 = vpop.f32.mrf.mxu0
        %1405 = vmatprep.mubr.bf16.mxu0 0
        %1406 = vmatmul.mubr.bf16.gmra.mxu0 %v1253
        %v1407 = vpop.f32.mrf.mxu0
        %v1408 = vadd.f32 0.0, %v1407
        %v1409 = vpop.f32.mrf.mxu0
        %v1410 = vpop.f32.mrf.mxu0
        %v1411 = vadd.f32 0.0, %v1410
        %v1412 = vpop.f32.mrf.mxu0
        %1413 = vmatprep.mubr.bf16.mxu0 0
        %1414 = vmatmul.mubr.bf16.gmra.mxu0 %v1255
        %v1415 = vpop.f32.mrf.mxu0
        %v1416 = vadd.f32 0.0, %v1415
        %v1417 = vpop.f32.mrf.mxu0
        %v1418 = vpop.f32.mrf.mxu0
        %v1419 = vadd.f32 0.0, %v1418
        %v1420 = vpop.f32.mrf.mxu0
        %1421 = vdwg.mxu0
        %v1422 = vpack.c.bf16 %v1299, %v1296
        %v1423 = vpack.c.bf16 %v1307, %v1304
        %v1424 = vpack.c.bf16 %v1315, %v1312
        %v1425 = vpack.c.bf16 %v1323, %v1320
        %v1426 = vpack.c.bf16 %v1331, %v1328
        %v1427 = vpack.c.bf16 %v1339, %v1336
        %v1428 = vpack.c.bf16 %v1347, %v1344
        %v1429 = vpack.c.bf16 %v1355, %v1352
        %v1430 = vpack.c.bf16 %v1363, %v1360
        %v1431 = vpack.c.bf16 %v1371, %v1368
        %v1432 = vpack.c.bf16 %v1379, %v1376
        %v1433 = vpack.c.bf16 %v1387, %v1384
        %v1434 = vpack.c.bf16 %v1395, %v1392
        %v1435 = vpack.c.bf16 %v1403, %v1400
        %v1436 = vpack.c.bf16 %v1411, %v1408
        %v1437 = vpack.c.bf16 %v1419, %v1416
        %v1454 = vunpack.c.l.b16 %v1422
        %v1455 = vunpack.c.h.b16 %v1422
        %v1456 = vunpack.c.l.b16 %v1423
        %v1457 = vunpack.c.h.b16 %v1423
        %v1458 = vunpack.c.l.b16 %v1424
        %v1459 = vunpack.c.h.b16 %v1424
        %v1460 = vunpack.c.l.b16 %v1425
        %v1461 = vunpack.c.h.b16 %v1425
        %v1462 = vunpack.c.l.b16 %v1426
        %v1463 = vunpack.c.h.b16 %v1426
        %v1464 = vunpack.c.l.b16 %v1427
        %v1465 = vunpack.c.h.b16 %v1427
        %v1466 = vunpack.c.l.b16 %v1428
        %v1467 = vunpack.c.h.b16 %v1428
        %v1468 = vunpack.c.l.b16 %v1429
        %v1469 = vunpack.c.h.b16 %v1429
        %v1470 = vunpack.c.l.b16 %v1430
        %v1471 = vunpack.c.h.b16 %v1430
        %v1472 = vunpack.c.l.b16 %v1431
        %v1473 = vunpack.c.h.b16 %v1431
        %v1474 = vunpack.c.l.b16 %v1432
        %v1475 = vunpack.c.h.b16 %v1432
        %v1476 = vunpack.c.l.b16 %v1433
        %v1477 = vunpack.c.h.b16 %v1433
        %v1478 = vunpack.c.l.b16 %v1434
        %v1479 = vunpack.c.h.b16 %v1434
        %v1480 = vunpack.c.l.b16 %v1435
        %v1481 = vunpack.c.h.b16 %v1435
        %v1482 = vunpack.c.l.b16 %v1436
        %v1483 = vunpack.c.h.b16 %v1436
        %v1484 = vunpack.c.l.b16 %v1437
        %v1485 = vunpack.c.h.b16 %v1437
        %v1486 = vpack.c.b16 %v1454, %v1454
        %v1487 = vpack.c.b16 %v1455, %v1455
        %v1488 = vpack.c.b16 %v1456, %v1456
        %v1489 = vpack.c.b16 %v1457, %v1457
        %v1490 = vpack.c.b16 %v1458, %v1458
        %v1491 = vpack.c.b16 %v1459, %v1459
        %v1492 = vpack.c.b16 %v1460, %v1460
        %v1493 = vpack.c.b16 %v1461, %v1461
        %v1494 = vpack.c.b16 %v1462, %v1462
        %v1495 = vpack.c.b16 %v1463, %v1463
        %v1496 = vpack.c.b16 %v1464, %v1464
        %v1497 = vpack.c.b16 %v1465, %v1465
        %v1498 = vpack.c.b16 %v1466, %v1466
        %v1499 = vpack.c.b16 %v1467, %v1467
        %v1500 = vpack.c.b16 %v1468, %v1468
        %v1501 = vpack.c.b16 %v1469, %v1469
        %v1502 = vpack.c.b16 %v1470, %v1470
        %v1503 = vpack.c.b16 %v1471, %v1471
        %v1504 = vpack.c.b16 %v1472, %v1472
        %v1505 = vpack.c.b16 %v1473, %v1473
        %v1506 = vpack.c.b16 %v1474, %v1474
        %v1507 = vpack.c.b16 %v1475, %v1475
        %v1508 = vpack.c.b16 %v1476, %v1476
        %v1509 = vpack.c.b16 %v1477, %v1477
        %v1510 = vpack.c.b16 %v1478, %v1478
        %v1511 = vpack.c.b16 %v1479, %v1479
        %v1512 = vpack.c.b16 %v1480, %v1480
        %v1513 = vpack.c.b16 %v1481, %v1481
        %v1514 = vpack.c.b16 %v1482, %v1482
        %v1515 = vpack.c.b16 %v1483, %v1483
        %v1516 = vpack.c.b16 %v1484, %v1484
        %v1517 = vpack.c.b16 %v1485, %v1485
        %1550 = vst [vmem:[%s194] sm:$0xf] %v1486
        %1551 = vst [vmem:[%s194 + $0x4] sm:$0xf] %v1487
        %1552 = vst [vmem:[%s194 + $0x8] sm:$0xf] %v1488
        %1553 = vst [vmem:[%s194 + $0xc] sm:$0xf] %v1489
        %1554 = vst [vmem:[%s194 + $0x10] sm:$0xf] %v1490
        %1555 = vst [vmem:[%s194 + $0x14] sm:$0xf] %v1491
        %1556 = vst [vmem:[%s194 + $0x18] sm:$0xf] %v1492
        %1557 = vst [vmem:[%s194 + $0x1c] sm:$0xf] %v1493
        %1558 = vst [vmem:[%s194 + $0x20] sm:$0xf] %v1494
        %1559 = vst [vmem:[%s194 + $0x24] sm:$0xf] %v1495
        %1560 = vst [vmem:[%s194 + $0x28] sm:$0xf] %v1496
        %1561 = vst [vmem:[%s194 + $0x2c] sm:$0xf] %v1497
        %1562 = vst [vmem:[%s194 + $0x30] sm:$0xf] %v1498
        %1563 = vst [vmem:[%s194 + $0x34] sm:$0xf] %v1499
        %1564 = vst [vmem:[%s194 + $0x38] sm:$0xf] %v1500
        %1565 = vst [vmem:[%s194 + $0x3c] sm:$0xf] %v1501
        %1566 = vst [vmem:[%s194 + $0x40] sm:$0xf] %v1502
        %1567 = vst [vmem:[%s194 + $0x44] sm:$0xf] %v1503
        %1568 = vst [vmem:[%s194 + $0x48] sm:$0xf] %v1504
        %1569 = vst [vmem:[%s194 + $0x4c] sm:$0xf] %v1505
        %1570 = vst [vmem:[%s194 + $0x50] sm:$0xf] %v1506
        %1571 = vst [vmem:[%s194 + $0x54] sm:$0xf] %v1507
        %1572 = vst [vmem:[%s194 + $0x58] sm:$0xf] %v1508
        %1573 = vst [vmem:[%s194 + $0x5c] sm:$0xf] %v1509
        %1574 = vst [vmem:[%s194 + $0x60] sm:$0xf] %v1510
        %1575 = vst [vmem:[%s194 + $0x64] sm:$0xf] %v1511
        %1576 = vst [vmem:[%s194 + $0x68] sm:$0xf] %v1512
        %1577 = vst [vmem:[%s194 + $0x6c] sm:$0xf] %v1513
        %1578 = vst [vmem:[%s194 + $0x70] sm:$0xf] %v1514
        %1579 = vst [vmem:[%s194 + $0x74] sm:$0xf] %v1515
        %1580 = vst [vmem:[%s194 + $0x78] sm:$0xf] %v1516
        %1581 = vst [vmem:[%s194 + $0x7c] sm:$0xf] %v1517
        %v1582 = vadd.f32 %v1296, %v1299
        %v1583 = vadd.f32 %v1582, %v1304
        %v1584 = vadd.f32 %v1583, %v1307
        %v1585 = vadd.f32 %v1584, %v1312
        %v1586 = vadd.f32 %v1585, %v1315
        %v1587 = vadd.f32 %v1586, %v1320
        %v1588 = vadd.f32 %v1587, %v1323
        %v1589 = vadd.f32 %v1588, %v1328
        %v1590 = vadd.f32 %v1589, %v1331
        %v1591 = vadd.f32 %v1590, %v1336
        %v1592 = vadd.f32 %v1591, %v1339
        %v1593 = vadd.f32 %v1592, %v1344
        %v1594 = vadd.f32 %v1593, %v1347
        %v1595 = vadd.f32 %v1594, %v1352
        %v1596 = vadd.f32 %v1595, %v1355
        %v1597 = vadd.f32 %v1596, %v1360
        %v1598 = vadd.f32 %v1597, %v1363
        %v1599 = vadd.f32 %v1598, %v1368
        %v1600 = vadd.f32 %v1599, %v1371
        %v1601 = vadd.f32 %v1600, %v1376
        %v1602 = vadd.f32 %v1601, %v1379
        %v1603 = vadd.f32 %v1602, %v1384
        %v1604 = vadd.f32 %v1603, %v1387
        %v1605 = vadd.f32 %v1604, %v1392
        %v1606 = vadd.f32 %v1605, %v1395
        %v1607 = vadd.f32 %v1606, %v1400
        %v1608 = vadd.f32 %v1607, %v1403
        %v1609 = vadd.f32 %v1608, %v1408
        %v1610 = vadd.f32 %v1609, %v1411
        %v1611 = vadd.f32 %v1610, %v1416
        %v1612 = vadd.f32 %v1611, %v1419
        %v1613 = vrot.slane %v1612, 4
        %v1614 = vadd.f32 %v1612, %v1613
        %v1615 = vrot.slane %v1614, 2
        %v1616 = vadd.f32 %v1614, %v1615
        %v1617 = vrot.slane %v1616, 1
        %v1618 = vadd.f32 %v1616, %v1617
        %v1619 = vadd.f32 %v1618, 0.0
        %v1620 = vmul.f32 %v1296, %v1296
        %v1621 = vmul.f32 %v1299, %v1299
        %v1622 = vmul.f32 %v1304, %v1304
        %v1623 = vmul.f32 %v1307, %v1307
        %v1624 = vmul.f32 %v1312, %v1312
        %v1625 = vmul.f32 %v1315, %v1315
        %v1626 = vmul.f32 %v1320, %v1320
        %v1627 = vmul.f32 %v1323, %v1323
        %v1628 = vmul.f32 %v1328, %v1328
        %v1629 = vmul.f32 %v1331, %v1331
        %v1630 = vmul.f32 %v1336, %v1336
        %v1631 = vmul.f32 %v1339, %v1339
        %v1632 = vmul.f32 %v1344, %v1344
        %v1633 = vmul.f32 %v1347, %v1347
        %v1634 = vmul.f32 %v1352, %v1352
        %v1635 = vmul.f32 %v1355, %v1355
        %v1636 = vmul.f32 %v1360, %v1360
        %v1637 = vmul.f32 %v1363, %v1363
        %v1638 = vmul.f32 %v1368, %v1368
        %v1639 = vmul.f32 %v1371, %v1371
        %v1640 = vmul.f32 %v1376, %v1376
        %v1641 = vmul.f32 %v1379, %v1379
        %v1642 = vmul.f32 %v1384, %v1384
        %v1643 = vmul.f32 %v1387, %v1387
        %v1644 = vmul.f32 %v1392, %v1392
        %v1645 = vmul.f32 %v1395, %v1395
        %v1646 = vmul.f32 %v1400, %v1400
        %v1647 = vmul.f32 %v1403, %v1403
        %v1648 = vmul.f32 %v1408, %v1408
        %v1649 = vmul.f32 %v1411, %v1411
        %v1650 = vmul.f32 %v1416, %v1416
        %v1651 = vmul.f32 %v1419, %v1419
        %v1652 = vadd.f32 %v1620, %v1621
        %v1653 = vadd.f32 %v1652, %v1622
        %v1654 = vadd.f32 %v1653, %v1623
        %v1655 = vadd.f32 %v1654, %v1624
        %v1656 = vadd.f32 %v1655, %v1625
        %v1657 = vadd.f32 %v1656, %v1626
        %v1658 = vadd.f32 %v1657, %v1627
        %v1659 = vadd.f32 %v1658, %v1628
        %v1660 = vadd.f32 %v1659, %v1629
        %v1661 = vadd.f32 %v1660, %v1630
        %v1662 = vadd.f32 %v1661, %v1631
        %v1663 = vadd.f32 %v1662, %v1632
        %v1664 = vadd.f32 %v1663, %v1633
        %v1665 = vadd.f32 %v1664, %v1634
        %v1666 = vadd.f32 %v1665, %v1635
        %v1667 = vadd.f32 %v1666, %v1636
        %v1668 = vadd.f32 %v1667, %v1637
        %v1669 = vadd.f32 %v1668, %v1638
        %v1670 = vadd.f32 %v1669, %v1639
        %v1671 = vadd.f32 %v1670, %v1640
        %v1672 = vadd.f32 %v1671, %v1641
        %v1673 = vadd.f32 %v1672, %v1642
        %v1674 = vadd.f32 %v1673, %v1643
        %v1675 = vadd.f32 %v1674, %v1644
        %v1676 = vadd.f32 %v1675, %v1645
        %v1677 = vadd.f32 %v1676, %v1646
        %v1678 = vadd.f32 %v1677, %v1647
        %v1679 = vadd.f32 %v1678, %v1648
        %v1680 = vadd.f32 %v1679, %v1649
        %v1681 = vadd.f32 %v1680, %v1650
        %v1682 = vadd.f32 %v1681, %v1651
        %v1683 = vrot.slane %v1682, 4
        %v1684 = vadd.f32 %v1682, %v1683
        %v1685 = vrot.slane %v1684, 2
        %v1686 = vadd.f32 %v1684, %v1685
        %v1687 = vrot.slane %v1686, 1
        %v1688 = vadd.f32 %v1686, %v1687
        %v1689 = vadd.f32 %v1688, 0.0
        %1690 = vst [vmem:[%s200] sm:$0x1] %v1619
        %1691 = vst [vmem:[%s206] sm:$0x1] %v1689
        %s1692 = sand.u32 %s77, 1
        %s1693 = scalar_lea.sflag [#allocation3], %s1692
        %s1694 = sand.u32 %s77, 1
        %s1695 = smul.addr %s1694, 128
        %s1696 = scalar_lea.vmem [#allocation2], %s1695
        %s1697 = sand.u32 %s22, 1
        %s1698 = scalar_lea.sflag [#allocation5], %s1697
        %s1699 = sand.u32 %s103, 1
        %s1700 = scalar_lea.vmem [#allocation4], %s1699
        %s1701 = sand.u32 %s22, 1
        %s1702 = scalar_lea.sflag [#allocation5], %s1701
        %s1703 = sand.u32 %s129, 1
        %s1704 = scalar_lea.vmem [#allocation6], %s1703
        // Predicated region
        $region29: #{tpu_custom_call.1} parent=27 // pred_check
          %p1705 = pneg %p87
        $region30: #{tpu_custom_call.1} parent=27 // pred_check_branch
          %1707 = sbr.rel (%p1705) target = $region32
        $region31: #{tpu_custom_call.1} parent=27 // pred_region
          %s1708 = smul.u32 32, %s22
          %s1710 = ssub.s32 2048, 2048
          %1711 = vsyncadd %s1693, %s1710
          %s1712 = smul.addr %s1708, 64
          %s1713 = scalar_lea.hbm %s2, %s1712
          %s1714 = sshll.u32 %s1696, 4
          %s1715 = int_to_ptr.vmem [resolvable:$true] %s1714
          %1720 = dma.vmem_to_hbm [thread:$0]  %s1715, 2048, %s1713, %s1693, 64, 64, 4
        $region32: #{tpu_custom_call.1} parent=27 // pred_fallthru
          _
        // Predicated region
        $region33: #{tpu_custom_call.1} parent=27 // pred_check
          %p1721 = pneg %p113
        $region34: #{tpu_custom_call.1} parent=27 // pred_check_branch
          %1723 = sbr.rel (%p1721) target = $region36
        $region35: #{tpu_custom_call.1} parent=27 // pred_region
          %s1725 = ssub.s32 16, 16
          %1726 = vsyncadd %s1698, %s1725
          %s1727 = smul.addr %s22, 16
          %s1728 = scalar_lea.hbm %s3, %s1727
          %s1730 = sshll.u32 %s1700, 4
          %s1731 = int_to_ptr.vmem [resolvable:$true] %s1730
          %1733 = dma.vmem_to_hbm [thread:$0]  %s1731, 16, %s1728, %s1698
        $region36: #{tpu_custom_call.1} parent=27 // pred_fallthru
          _
        // Predicated region
        $region37: #{tpu_custom_call.1} parent=27 // pred_check
          %p1734 = pneg %p139
        $region38: #{tpu_custom_call.1} parent=27 // pred_check_branch
          %1736 = sbr.rel (%p1734) target = $region40
        $region39: #{tpu_custom_call.1} parent=27 // pred_region
          %s1738 = ssub.s32 16, 16
          %1739 = vsyncadd %s1702, %s1738
          %s1740 = smul.addr %s22, 16
          %s1741 = scalar_lea.hbm %s4, %s1740
          %s1743 = sshll.u32 %s1704, 4
          %s1744 = int_to_ptr.vmem [resolvable:$true] %s1743
          %1746 = dma.vmem_to_hbm [thread:$0]  %s1744, 16, %s1741, %s1702
        $region40: #{tpu_custom_call.1} parent=27 // pred_fallthru
          _
      $region28: #{tpu_custom_call.1} parent=5 // pred_fallthru
        _
      %p1747 = scmp.le.s32.totalorder 2, %s17
      // Predicated region
      $region41: #{tpu_custom_call.1} parent=5 // pred_check
        %p1748 = pneg %p1747
      $region42: #{tpu_custom_call.1} parent=5 // pred_check_branch
        %1750 = sbr.rel (%p1748) target = $region44
      $region43: #{tpu_custom_call.1} parent=5 // pred_region
        %s1751 = ssub.s32 %s17, 2
        // Predicated region
        $region45: #{tpu_custom_call.1} parent=43 // pred_check
          %p1752 = pneg %p93
        $region46: #{tpu_custom_call.1} parent=43 // pred_check_branch
          %1754 = sbr.rel (%p1752) target = $region48
        $region47: #{tpu_custom_call.1} parent=43 // pred_region
          %s1755 = sand.u32 %s78, 1
          %s1756 = scalar_lea.sflag [#allocation3], %s1755
          %s1757 = sand.u32 %s78, 1
          %s1758 = smul.addr %s1757, 128
          %s1759 = scalar_lea.vmem [#allocation2], %s1758
          %1760 = dma.done %s1756, 2048
        $region48: #{tpu_custom_call.1} parent=43 // pred_fallthru
          _
        // Predicated region
        $region49: #{tpu_custom_call.1} parent=43 // pred_check
          %p1761 = pneg %p119
        $region50: #{tpu_custom_call.1} parent=43 // pred_check_branch
          %1763 = sbr.rel (%p1761) target = $region52
        $region51: #{tpu_custom_call.1} parent=43 // pred_region
          %s1764 = sand.u32 %s23, 1
          %s1765 = scalar_lea.sflag [#allocation5], %s1764
          %s1766 = sand.u32 %s104, 1
          %s1767 = scalar_lea.vmem [#allocation4], %s1766
          %1768 = dma.done %s1765, 16
        $region52: #{tpu_custom_call.1} parent=43 // pred_fallthru
          _
        // Predicated region
        $region53: #{tpu_custom_call.1} parent=43 // pred_check
          %p1769 = pneg %p145
        $region54: #{tpu_custom_call.1} parent=43 // pred_check_branch
          %1771 = sbr.rel (%p1769) target = $region56
        $region55: #{tpu_custom_call.1} parent=43 // pred_region
          %s1772 = sand.u32 %s23, 1
          %s1773 = scalar_lea.sflag [#allocation5], %s1772
          %s1774 = sand.u32 %s130, 1
          %s1775 = scalar_lea.vmem [#allocation6], %s1774
          %1776 = dma.done %s1773, 16
        $region56: #{tpu_custom_call.1} parent=43 // pred_fallthru
          _
      $region44: #{tpu_custom_call.1} parent=5 // pred_fallthru
        _
    $region6: #{tpu_custom_call.1} parent=1 // loop_footer
      %s21 = sadd.s32 1, %s17
    $region7: #{tpu_custom_call.1} parent=1 // loop_footer_branch
      %16 = sbr.rel target = $region3
    $region8: #{tpu_custom_call.1} parent=1 // loop_exit
      _
    %1777 = vsyncpa [#allocation3], 1
    %s1778 = scalar_lea.sflag [#allocation3], 1
    %1779 = vsyncpa %s1778, 1
    %1780 = vsyncpa [#allocation5], 1
    %s1781 = scalar_lea.sflag [#allocation5], 1
    %1782 = vsyncpa %s1781, 1

</llo_original>
